<compile_context>
chip_gen: v5e
topology: v5e:2x2
jax: 0.10.0
libtpu: 0.0.40
codegen_flags: <defaults>
</compile_context>

<pallas_src>
import jax
import jax.numpy as jnp
from jax import lax
from jax.experimental import pallas as pl
from jax.experimental.pallas import tpu as pltpu

# ----- hyper-parameters: FourierBlock(modes=(4,4), in=4, out=4, hidden=32) ----
B, C_IN, C_OUT, H, W = 2, 4, 4, 16, 16
MODES = (4, 4)
HIDDEN = 32

N_PIX = B * H * W            # 512 flattened pixels -> lane-dense last axis
PAD = W + 1                  # covers the largest 3x3 tap offset (+-(W+1))
N_PAD = N_PIX + 2 * PAD      # padded pixel-stream length

assert (W & (W - 1)) == 0 and ((H * W) & ((H * W) - 1)) == 0, (
    "in-kernel row/col decoding uses bit masks and assumes power-of-two H*W, W")


# --------------------------- in-kernel GELU (exact) ---------------------------
def _erf_approx(z):
    # Abramowitz & Stegun 7.1.26, |err| < 1.5e-7 -> matches nn.GELU() (exact
    # erf) without relying on an erf lowering inside Mosaic.  The tanh-GELU /
    # EUP variant suggested for v5e/v6e was considered but kept out to preserve
    # exact-erf numerics; the exp below already runs in the EUP slot.
    a1, a2, a3, a4, a5 = (0.254829592, -0.284496736, 1.421413741,
                          -1.453152027, 1.061405429)
    p = 0.3275911
    s = jnp.where(z >= 0, 1.0, -1.0)
    az = jnp.abs(z)
    t = 1.0 / (1.0 + p * az)
    poly = ((((a5 * t + a4) * t + a3) * t + a2) * t + a1) * t
    return s * (1.0 - poly * jnp.exp(-az * az))


def _gelu_exact(x):
    return 0.5 * x * (1.0 + _erf_approx(x * 0.7071067811865476))


# ------- Pallas kernel: MLP + 3x3 conv (in-kernel im2col) + branch sum --------
def _fused_block_kernel(xw_ref, xs_ref, w1_ref, wf_ref, wt_ref, o_ref):
    # xw_ref: (C_IN+1, N_PAD)  rows 0..C_IN-1: flattened pixels (n = b*H*W +
    #                          r*W + c), zero-padded by PAD on both sides of
    #                          the pixel axis; row C_IN: all ones (bias fold).
    # xs_ref: (C_OUT, N_PIX)   spectral-conv branch, already in spatial domain.
    # w1_ref: (HIDDEN, C_IN+1)         [w_mlp1 | b_mlp1]
    # wf_ref: (C_OUT, HIDDEN+C_IN+1)   [w_mlp2 | w_conv centre tap | b_mlp2+b_conv]
    # wt_ref: (8, C_OUT, C_IN+1)       off-centre conv taps (last column zero)
    # o_ref : (C_OUT, N_PIX)
    xc = xw_ref[:, PAD:PAD + N_PIX]               # centre window (C_IN+1, N)

    # MLP layer 1 (bias via the ones row) + exact GELU.
    h = _gelu_exact(jnp.dot(w1_ref[...], xc,
                            preferred_element_type=jnp.float32))

    # Fused dot: MLP layer 2 + 3x3-conv centre tap + (b_mlp2 + b_conv).
    # Concat offsets are sublane-tile aligned (32 is a multiple of 8).
    acc = jnp.dot(wf_ref[...], jnp.concatenate([h, xc], axis=0),
                  preferred_element_type=jnp.float32)

    # Off-centre conv taps: shifted lane windows of the padded pixel stream,
    # masked at image-row / image boundaries, accumulated with small dots.
    pix = lax.broadcasted_iota(jnp.int32, (C_IN + 1, N_PIX), 1)
    rpix = jnp.bitwise_and(pix, H * W - 1)        # pixel index within an image
    col = jnp.bitwise_and(pix, W - 1)             # column within an image row

    t = 0
    for kh in range(3):
        for kw in range(3):
            dh, dw = kh - 1, kw - 1
            if dh == 0 and dw == 0:
                continue                           # centre tap already fused
            start = PAD + dh * W + dw
            win = xw_ref[:, start:start + N_PIX]   # (C_IN+1, N) shifted window
            conds = []
            if dh < 0:
                conds.append(rpix >= (-dh) * W)    # r + dh >= 0
            elif dh > 0:
                conds.append(rpix < (H - dh) * W)  # r + dh < H
            if dw < 0:
                conds.append(col >= -dw)           # c + dw >= 0
            elif dw > 0:
                conds.append(col < W - dw)         # c + dw < W
            valid = conds[0]
            for cnd in conds[1:]:
                valid = valid & cnd
            acc = acc + jnp.dot(wt_ref[t], jnp.where(valid, win, 0.0),
                                preferred_element_type=jnp.float32)
            t += 1

    o_ref[...] = xs_ref[...] + acc


def fused_pointwise(xw, xs_flat, w1_aug, wf, w_taps):
    # Single invocation, whole arrays as VMEM blocks: no grid / pipelining
    # machinery.  If scaled to much larger B*H*W, reintroduce a "parallel"
    # pixel-axis grid (>= 2 steps for v7x's two TensorCores) sized against
    # v7x's 64 MiB VMEM (32 MiB default scoped limit).
    vmem = lambda: pl.BlockSpec(memory_space=pltpu.MemorySpace.VMEM)
    return pl.pallas_call(
        _fused_block_kernel,
        out_shape=jax.ShapeDtypeStruct((C_OUT, N_PIX), jnp.float32),
        in_specs=[vmem() for _ in range(5)],
        out_specs=vmem(),
    )(xw, xs_flat, w1_aug, wf, w_taps)


# ------------------------------- forward pass --------------------------------
def fourier_block_forward(x, params, bias=False):
    b, c_in, h, w = x.shape
    m1, m2 = MODES
    c_out = params["w_conv"].shape[0]
    n = b * h * w
    assert (b, c_in, h, w) == (B, C_IN, H, W) and n == N_PIX

    # ---- Spectral convolution branch ----
    # TODO(synk): rfft2/irfft2 have no Pallas TPU equivalent; per the perf
    # review the tiny (~16 KFLOP) low-mode complex channel mix between the two
    # FFTs also stays in XLA (a dedicated Pallas kernel cost more in launch
    # overhead and lane-padded tiles than the arithmetic it runs).
    w1c = params["w1_r"] + 1j * params["w1_i"]
    w2c = params["w2_r"] + 1j * params["w2_i"]
    x_ft = jnp.fft.rfft2(x, axes=(-2, -1))
    out_ft = jnp.zeros((b, c_out, h, w // 2 + 1), jnp.complex64)
    out_ft = out_ft.at[:, :, :m1, :m2].set(
        jnp.einsum("bixy,ioxy->boxy", x_ft[:, :, :m1, :m2], w1c))
    out_ft = out_ft.at[:, :, -m1:, :m2].set(
        jnp.einsum("bixy,ioxy->boxy", x_ft[:, :, -m1:, :m2], w2c))
    x_spec = jnp.fft.irfft2(out_ft, s=(h, w), axes=(-2, -1)).astype(jnp.float32)

    # ---- Fused pointwise path (one Pallas call) ----
    # Channels-first flattened pixel stream, zero-padded by PAD on both sides
    # (so the nine 3x3 windows are static lane slices inside the kernel), plus
    # a constant ones row that folds the biases into the matmuls.
    x_flat = x.transpose(1, 0, 2, 3).reshape(c_in, n).astype(jnp.float32)
    zpad = jnp.zeros((c_in, PAD), jnp.float32)
    xw = jnp.concatenate(
        [jnp.concatenate([zpad, x_flat, zpad], axis=1),
         jnp.ones((1, N_PAD), jnp.float32)], axis=0)            # (C_IN+1, N_PAD)
    xs_flat = x_spec.transpose(1, 0, 2, 3).reshape(c_out, n)    # (C_OUT, N)

    w1_aug = jnp.concatenate(
        [params["w_mlp1"], params["b_mlp1"][:, None]], axis=1)  # (HIDDEN, C_IN+1)
    wf = jnp.concatenate(
        [params["w_mlp2"],
         params["w_conv"][:, :, 1, 1],
         (params["b_mlp2"] + params["b_conv"])[:, None]],
        axis=1)                                      # (C_OUT, HIDDEN+C_IN+1)
    taps = [params["w_conv"][:, :, kh, kw]
            for kh in range(3) for kw in range(3) if (kh, kw) != (1, 1)]
    w_taps = jnp.concatenate(
        [jnp.stack(taps, axis=0), jnp.zeros((8, c_out, 1), jnp.float32)],
        axis=2)                                      # (8, C_OUT, C_IN+1)

    out_flat = fused_pointwise(xw, xs_flat, w1_aug, wf, w_taps)
    out = out_flat.reshape(c_out, b, h, w).transpose(1, 0, 2, 3)
    if bias:
        # Residual add of the input (only well-defined when C_IN == C_OUT).
        assert c_in == c_out, "bias=True requires in_channels == out_channels"
        out = out + x
    return out


# --------------------------- pure-JAX reference -------------------------------
def reference_forward(x, params, bias=False):
    m1, m2 = MODES
    b, c_in, h, w = x.shape
    c_out = params["w_conv"].shape[0]
    w1c = params["w1_r"] + 1j * params["w1_i"]
    w2c = params["w2_r"] + 1j * params["w2_i"]

    x_ft = jnp.fft.rfft2(x, axes=(-2, -1))
    out_ft = jnp.zeros((b, c_out, h, w // 2 + 1), jnp.complex64)
    out_ft = out_ft.at[:, :, :m1, :m2].set(
        jnp.einsum("bixy,ioxy->boxy", x_ft[:, :, :m1, :m2], w1c))
    out_ft = out_ft.at[:, :, -m1:, :m2].set(
        jnp.einsum("bixy,ioxy->boxy", x_ft[:, :, -m1:, :m2], w2c))
    x_spec = jnp.fft.irfft2(out_ft, s=(h, w), axes=(-2, -1))

    hdn = (jnp.einsum("oi,bihw->bohw", params["w_mlp1"], x)
           + params["b_mlp1"][None, :, None, None])
    hdn = 0.5 * hdn * (1.0 + jax.scipy.special.erf(hdn / jnp.sqrt(2.0)))
    x_mlp = (jnp.einsum("oi,bihw->bohw", params["w_mlp2"], hdn)
             + params["b_mlp2"][None, :, None, None])

    x_conv = lax.conv_general_dilated(
        x, params["w_conv"], window_strides=(1, 1), padding="SAME",
        dimension_numbers=("NCHW", "OIHW", "NCHW"))
    x_conv = x_conv + params["b_conv"][None, :, None, None]

    out = x_spec + x_mlp + x_conv
    if bias:
        out = out + x
    return out


# ----------------------- deterministic parameter init -------------------------
def init_params(key):
    m1, m2 = MODES
    ks = jax.random.split(key, 9)
    scale = 1.0 / (C_IN * C_OUT)
    return {
        # SpectralConvolution complex weights (two corners of the spectrum)
        "w1_r": scale * jax.random.uniform(ks[0], (C_IN, C_OUT, m1, m2), jnp.float32),
        "w1_i": scale * jax.random.uniform(ks[1], (C_IN, C_OUT, m1, m2), jnp.float32),
        "w2_r": scale * jax.random.uniform(ks[2], (C_IN, C_OUT, m1, m2), jnp.float32),
        "w2_i": scale * jax.random.uniform(ks[3], (C_IN, C_OUT, m1, m2), jnp.float32),
        # MLP = two 1x1 convs with GELU in between
        "w_mlp1": (1.0 / jnp.sqrt(C_IN)) * jax.random.normal(ks[4], (HIDDEN, C_IN), jnp.float32),
        "b_mlp1": 0.01 * jax.random.normal(ks[5], (HIDDEN,), jnp.float32),
        "w_mlp2": (1.0 / jnp.sqrt(HIDDEN)) * jax.random.normal(ks[6], (C_OUT, HIDDEN), jnp.float32),
        "b_mlp2": 0.01 * jax.random.normal(ks[7], (C_OUT,), jnp.float32),
        # nn.Conv2d(in, out, 3, padding=1)
        "w_conv": (1.0 / jnp.sqrt(C_IN * 9.0)) * jax.random.normal(ks[8], (C_OUT, C_IN, 3, 3), jnp.float32),
        "b_conv": jnp.zeros((C_OUT,), jnp.float32),
    }


if __name__ == "__main__":
    key = jax.random.PRNGKey(0)
    pkey, xkey = jax.random.split(key)
    params = init_params(pkey)
    x = jax.random.normal(xkey, (B, C_IN, H, W), jnp.float32)

    out = jax.jit(fourier_block_forward)(x, params)
    out = jax.block_until_ready(out)

    ref = reference_forward(x, params)
    err = float(jnp.max(jnp.abs(out - ref)))
    assert out.shape == (B, C_OUT, H, W), out.shape
    assert err < 1e-3, f"max abs err too large: {err}"
    print("KERNEL_OK")
</pallas_src>

<mosaic_0001>
module attributes {stable_mosaic.version = 11 : i64} {
  func.func @_fused_block_kernel(%arg0: memref<5x546xf32, #tpu.memory_space<vmem>>, %arg1: memref<4x512xf32, #tpu.memory_space<vmem>>, %arg2: memref<32x5xf32, #tpu.memory_space<vmem>>, %arg3: memref<4x37xf32, #tpu.memory_space<vmem>>, %arg4: memref<8x4x5xf32, #tpu.memory_space<vmem>>, %arg5: memref<4x512xf32, #tpu.memory_space<vmem>>) attributes {dimension_semantics = [], scalar_prefetch = 0 : i64, scratch_operands = 0 : i64, tpu.core_type = #tpu.core_type<tc>} {
    %c0 = arith.constant 0 : index
    %c17 = arith.constant 17 : index
    %0 = vector.load %arg0[%c0, %c17] : memref<5x546xf32, #tpu.memory_space<vmem>>, vector<5x512xf32>
    %c0_0 = arith.constant 0 : index
    %c0_1 = arith.constant 0 : index
    %1 = vector.load %arg2[%c0_0, %c0_1] : memref<32x5xf32, #tpu.memory_space<vmem>>, vector<32x5xf32>
    %cst = arith.constant dense<0.000000e+00> : vector<32x512xf32>
    %2 = tpu.matmul %1, %0, %cst {dimension_numbers = #tpu.dot_dimension_numbers<[1], [0], [0], [1], [0, 0, 1, 1], [], []>} : vector<32x5xf32>, vector<5x512xf32>, vector<32x512xf32> -> vector<32x512xf32>
    %cst_2 = arith.constant 5.000000e-01 : f32
    %3 = vector.broadcast %cst_2 : f32 to vector<32x512xf32>
    %4 = arith.mulf %3, %2 : vector<32x512xf32>
    %cst_3 = arith.constant 0.707106769 : f32
    %5 = vector.broadcast %cst_3 : f32 to vector<32x512xf32>
    %6 = arith.mulf %2, %5 : vector<32x512xf32>
    %cst_4 = arith.constant 0.000000e+00 : f32
    %7 = vector.broadcast %cst_4 : f32 to vector<32x512xf32>
    %8 = arith.cmpf oge, %6, %7 : vector<32x512xf32>
    %cst_5 = arith.constant 1.000000e+00 : f32
    %cst_6 = arith.constant -1.000000e+00 : f32
    %9 = vector.broadcast %cst_5 : f32 to vector<32x512xf32>
    %10 = vector.broadcast %cst_6 : f32 to vector<32x512xf32>
    %11 = arith.select %8, %9, %10 : vector<32x512xi1>, vector<32x512xf32>
    %12 = math.absf %6 : vector<32x512xf32>
    %cst_7 = arith.constant 0.327591091 : f32
    %13 = vector.broadcast %cst_7 : f32 to vector<32x512xf32>
    %14 = arith.mulf %13, %12 : vector<32x512xf32>
    %cst_8 = arith.constant 1.000000e+00 : f32
    %15 = vector.broadcast %cst_8 : f32 to vector<32x512xf32>
    %16 = arith.addf %15, %14 : vector<32x512xf32>
    %cst_9 = arith.constant 1.000000e+00 : f32
    %17 = vector.broadcast %cst_9 : f32 to vector<32x512xf32>
    %18 = arith.divf %17, %16 : vector<32x512xf32>
    %cst_10 = arith.constant 1.06140542 : f32
    %19 = vector.broadcast %cst_10 : f32 to vector<32x512xf32>
    %20 = arith.mulf %19, %18 : vector<32x512xf32>
    %cst_11 = arith.constant -1.45315206 : f32
    %21 = vector.broadcast %cst_11 : f32 to vector<32x512xf32>
    %22 = arith.addf %20, %21 : vector<32x512xf32>
    %23 = arith.mulf %22, %18 : vector<32x512xf32>
    %cst_12 = arith.constant 1.42141378 : f32
    %24 = vector.broadcast %cst_12 : f32 to vector<32x512xf32>
    %25 = arith.addf %23, %24 : vector<32x512xf32>
    %26 = arith.mulf %25, %18 : vector<32x512xf32>
    %cst_13 = arith.constant -0.284496725 : f32
    %27 = vector.broadcast %cst_13 : f32 to vector<32x512xf32>
    %28 = arith.addf %26, %27 : vector<32x512xf32>
    %29 = arith.mulf %28, %18 : vector<32x512xf32>
    %cst_14 = arith.constant 0.254829586 : f32
    %30 = vector.broadcast %cst_14 : f32 to vector<32x512xf32>
    %31 = arith.addf %29, %30 : vector<32x512xf32>
    %32 = arith.mulf %31, %18 : vector<32x512xf32>
    %cst_15 = arith.constant 0.000000e+00 : f32
    %33 = vector.broadcast %cst_15 : f32 to vector<32x512xf32>
    %34 = arith.subf %33, %12 : vector<32x512xf32>
    %35 = arith.mulf %34, %12 : vector<32x512xf32>
    %36 = math.exp %35 : vector<32x512xf32>
    %37 = arith.mulf %32, %36 : vector<32x512xf32>
    %cst_16 = arith.constant 1.000000e+00 : f32
    %38 = vector.broadcast %cst_16 : f32 to vector<32x512xf32>
    %39 = arith.subf %38, %37 : vector<32x512xf32>
    %40 = arith.mulf %11, %39 : vector<32x512xf32>
    %cst_17 = arith.constant 1.000000e+00 : f32
    %41 = vector.broadcast %cst_17 : f32 to vector<32x512xf32>
    %42 = arith.addf %41, %40 : vector<32x512xf32>
    %43 = arith.mulf %4, %42 : vector<32x512xf32>
    %c0_18 = arith.constant 0 : index
    %c0_19 = arith.constant 0 : index
    %44 = vector.load %arg3[%c0_18, %c0_19] : memref<4x37xf32, #tpu.memory_space<vmem>>, vector<4x37xf32>
    %45 = tpu.concatenate %43, %0 in 0 : vector<32x512xf32>, vector<5x512xf32> -> vector<37x512xf32>
    %cst_20 = arith.constant dense<0.000000e+00> : vector<4x512xf32>
    %46 = tpu.matmul %44, %45, %cst_20 {dimension_numbers = #tpu.dot_dimension_numbers<[1], [0], [0], [1], [0, 0, 1, 1], [], []>} : vector<4x37xf32>, vector<37x512xf32>, vector<4x512xf32> -> vector<4x512xf32>
    %47 = tpu.iota {dimensions = array<i32: 1>} : vector<5x512xi32>
    %c255_i32 = arith.constant 255 : i32
    %48 = vector.broadcast %c255_i32 : i32 to vector<5x512xi32>
    %49 = arith.andi %47, %48 : vector<5x512xi32>
    %c15_i32 = arith.constant 15 : i32
    %50 = vector.broadcast %c15_i32 : i32 to vector<5x512xi32>
    %51 = arith.andi %47, %50 : vector<5x512xi32>
    %c0_21 = arith.constant 0 : index
    %c0_22 = arith.constant 0 : index
    %52 = vector.load %arg0[%c0_21, %c0_22] : memref<5x546xf32, #tpu.memory_space<vmem>>, vector<5x512xf32>
    %c16_i32 = arith.constant 16 : i32
    %53 = vector.broadcast %c16_i32 : i32 to vector<5x512xi32>
    %54 = arith.cmpi sge, %49, %53 : vector<5x512xi32>
    %c1_i32 = arith.constant 1 : i32
    %55 = vector.broadcast %c1_i32 : i32 to vector<5x512xi32>
    %56 = arith.cmpi sge, %51, %55 : vector<5x512xi32>
    %57 = arith.andi %54, %56 : vector<5x512xi1>
    %c0_23 = arith.constant 0 : index
    %c0_24 = arith.constant 0 : index
    %c0_25 = arith.constant 0 : index
    %58 = vector.load %arg4[%c0_23, %c0_24, %c0_25] : memref<8x4x5xf32, #tpu.memory_space<vmem>>, vector<1x4x5xf32>
    %59 = vector.shape_cast %58 : vector<1x4x5xf32> to vector<4x5xf32>
    %cst_26 = arith.constant 0.000000e+00 : f32
    %60 = vector.broadcast %cst_26 : f32 to vector<5x512xf32>
    %61 = arith.select %57, %52, %60 : vector<5x512xi1>, vector<5x512xf32>
    %cst_27 = arith.constant dense<0.000000e+00> : vector<4x512xf32>
    %62 = tpu.matmul %59, %61, %cst_27 {dimension_numbers = #tpu.dot_dimension_numbers<[1], [0], [0], [1], [0, 0, 1, 1], [], []>} : vector<4x5xf32>, vector<5x512xf32>, vector<4x512xf32> -> vector<4x512xf32>
    %63 = arith.addf %46, %62 : vector<4x512xf32>
    %c0_28 = arith.constant 0 : index
    %c1 = arith.constant 1 : index
    %64 = vector.load %arg0[%c0_28, %c1] : memref<5x546xf32, #tpu.memory_space<vmem>>, vector<5x512xf32>
    %c16_i32_29 = arith.constant 16 : i32
    %65 = vector.broadcast %c16_i32_29 : i32 to vector<5x512xi32>
    %66 = arith.cmpi sge, %49, %65 : vector<5x512xi32>
    %c1_30 = arith.constant 1 : index
    %c0_31 = arith.constant 0 : index
    %c0_32 = arith.constant 0 : index
    %67 = vector.load %arg4[%c1_30, %c0_31, %c0_32] : memref<8x4x5xf32, #tpu.memory_space<vmem>>, vector<1x4x5xf32>
    %68 = vector.shape_cast %67 : vector<1x4x5xf32> to vector<4x5xf32>
    %cst_33 = arith.constant 0.000000e+00 : f32
    %69 = vector.broadcast %cst_33 : f32 to vector<5x512xf32>
    %70 = arith.select %66, %64, %69 : vector<5x512xi1>, vector<5x512xf32>
    %cst_34 = arith.constant dense<0.000000e+00> : vector<4x512xf32>
    %71 = tpu.matmul %68, %70, %cst_34 {dimension_numbers = #tpu.dot_dimension_numbers<[1], [0], [0], [1], [0, 0, 1, 1], [], []>} : vector<4x5xf32>, vector<5x512xf32>, vector<4x512xf32> -> vector<4x512xf32>
    %72 = arith.addf %63, %71 : vector<4x512xf32>
    %c0_35 = arith.constant 0 : index
    %c2 = arith.constant 2 : index
    %73 = vector.load %arg0[%c0_35, %c2] : memref<5x546xf32, #tpu.memory_space<vmem>>, vector<5x512xf32>
    %c16_i32_36 = arith.constant 16 : i32
    %74 = vector.broadcast %c16_i32_36 : i32 to vector<5x512xi32>
    %75 = arith.cmpi sge, %49, %74 : vector<5x512xi32>
    %c15_i32_37 = arith.constant 15 : i32
    %76 = vector.broadcast %c15_i32_37 : i32 to vector<5x512xi32>
    %77 = arith.cmpi slt, %51, %76 : vector<5x512xi32>
    %78 = arith.andi %75, %77 : vector<5x512xi1>
    %c2_38 = arith.constant 2 : index
    %c0_39 = arith.constant 0 : index
    %c0_40 = arith.constant 0 : index
    %79 = vector.load %arg4[%c2_38, %c0_39, %c0_40] : memref<8x4x5xf32, #tpu.memory_space<vmem>>, vector<1x4x5xf32>
    %80 = vector.shape_cast %79 : vector<1x4x5xf32> to vector<4x5xf32>
    %cst_41 = arith.constant 0.000000e+00 : f32
    %81 = vector.broadcast %cst_41 : f32 to vector<5x512xf32>
    %82 = arith.select %78, %73, %81 : vector<5x512xi1>, vector<5x512xf32>
    %cst_42 = arith.constant dense<0.000000e+00> : vector<4x512xf32>
    %83 = tpu.matmul %80, %82, %cst_42 {dimension_numbers = #tpu.dot_dimension_numbers<[1], [0], [0], [1], [0, 0, 1, 1], [], []>} : vector<4x5xf32>, vector<5x512xf32>, vector<4x512xf32> -> vector<4x512xf32>
    %84 = arith.addf %72, %83 : vector<4x512xf32>
    %c0_43 = arith.constant 0 : index
    %c16 = arith.constant 16 : index
    %85 = vector.load %arg0[%c0_43, %c16] : memref<5x546xf32, #tpu.memory_space<vmem>>, vector<5x512xf32>
    %c1_i32_44 = arith.constant 1 : i32
    %86 = vector.broadcast %c1_i32_44 : i32 to vector<5x512xi32>
    %87 = arith.cmpi sge, %51, %86 : vector<5x512xi32>
    %c3 = arith.constant 3 : index
    %c0_45 = arith.constant 0 : index
    %c0_46 = arith.constant 0 : index
    %88 = vector.load %arg4[%c3, %c0_45, %c0_46] : memref<8x4x5xf32, #tpu.memory_space<vmem>>, vector<1x4x5xf32>
    %89 = vector.shape_cast %88 : vector<1x4x5xf32> to vector<4x5xf32>
    %cst_47 = arith.constant 0.000000e+00 : f32
    %90 = vector.broadcast %cst_47 : f32 to vector<5x512xf32>
    %91 = arith.select %87, %85, %90 : vector<5x512xi1>, vector<5x512xf32>
    %cst_48 = arith.constant dense<0.000000e+00> : vector<4x512xf32>
    %92 = tpu.matmul %89, %91, %cst_48 {dimension_numbers = #tpu.dot_dimension_numbers<[1], [0], [0], [1], [0, 0, 1, 1], [], []>} : vector<4x5xf32>, vector<5x512xf32>, vector<4x512xf32> -> vector<4x512xf32>
    %93 = arith.addf %84, %92 : vector<4x512xf32>
    %c0_49 = arith.constant 0 : index
    %c18 = arith.constant 18 : index
    %94 = vector.load %arg0[%c0_49, %c18] : memref<5x546xf32, #tpu.memory_space<vmem>>, vector<5x512xf32>
    %c15_i32_50 = arith.constant 15 : i32
    %95 = vector.broadcast %c15_i32_50 : i32 to vector<5x512xi32>
    %96 = arith.cmpi slt, %51, %95 : vector<5x512xi32>
    %c4 = arith.constant 4 : index
    %c0_51 = arith.constant 0 : index
    %c0_52 = arith.constant 0 : index
    %97 = vector.load %arg4[%c4, %c0_51, %c0_52] : memref<8x4x5xf32, #tpu.memory_space<vmem>>, vector<1x4x5xf32>
    %98 = vector.shape_cast %97 : vector<1x4x5xf32> to vector<4x5xf32>
    %cst_53 = arith.constant 0.000000e+00 : f32
    %99 = vector.broadcast %cst_53 : f32 to vector<5x512xf32>
    %100 = arith.select %96, %94, %99 : vector<5x512xi1>, vector<5x512xf32>
    %cst_54 = arith.constant dense<0.000000e+00> : vector<4x512xf32>
    %101 = tpu.matmul %98, %100, %cst_54 {dimension_numbers = #tpu.dot_dimension_numbers<[1], [0], [0], [1], [0, 0, 1, 1], [], []>} : vector<4x5xf32>, vector<5x512xf32>, vector<4x512xf32> -> vector<4x512xf32>
    %102 = arith.addf %93, %101 : vector<4x512xf32>
    %c0_55 = arith.constant 0 : index
    %c32 = arith.constant 32 : index
    %103 = vector.load %arg0[%c0_55, %c32] : memref<5x546xf32, #tpu.memory_space<vmem>>, vector<5x512xf32>
    %c240_i32 = arith.constant 240 : i32
    %104 = vector.broadcast %c240_i32 : i32 to vector<5x512xi32>
    %105 = arith.cmpi slt, %49, %104 : vector<5x512xi32>
    %c1_i32_56 = arith.constant 1 : i32
    %106 = vector.broadcast %c1_i32_56 : i32 to vector<5x512xi32>
    %107 = arith.cmpi sge, %51, %106 : vector<5x512xi32>
    %108 = arith.andi %105, %107 : vector<5x512xi1>
    %c5 = arith.constant 5 : index
    %c0_57 = arith.constant 0 : index
    %c0_58 = arith.constant 0 : index
    %109 = vector.load %arg4[%c5, %c0_57, %c0_58] : memref<8x4x5xf32, #tpu.memory_space<vmem>>, vector<1x4x5xf32>
    %110 = vector.shape_cast %109 : vector<1x4x5xf32> to vector<4x5xf32>
    %cst_59 = arith.constant 0.000000e+00 : f32
    %111 = vector.broadcast %cst_59 : f32 to vector<5x512xf32>
    %112 = arith.select %108, %103, %111 : vector<5x512xi1>, vector<5x512xf32>
    %cst_60 = arith.constant dense<0.000000e+00> : vector<4x512xf32>
    %113 = tpu.matmul %110, %112, %cst_60 {dimension_numbers = #tpu.dot_dimension_numbers<[1], [0], [0], [1], [0, 0, 1, 1], [], []>} : vector<4x5xf32>, vector<5x512xf32>, vector<4x512xf32> -> vector<4x512xf32>
    %114 = arith.addf %102, %113 : vector<4x512xf32>
    %c0_61 = arith.constant 0 : index
    %c33 = arith.constant 33 : index
    %115 = vector.load %arg0[%c0_61, %c33] : memref<5x546xf32, #tpu.memory_space<vmem>>, vector<5x512xf32>
    %c240_i32_62 = arith.constant 240 : i32
    %116 = vector.broadcast %c240_i32_62 : i32 to vector<5x512xi32>
    %117 = arith.cmpi slt, %49, %116 : vector<5x512xi32>
    %c6 = arith.constant 6 : index
    %c0_63 = arith.constant 0 : index
    %c0_64 = arith.constant 0 : index
    %118 = vector.load %arg4[%c6, %c0_63, %c0_64] : memref<8x4x5xf32, #tpu.memory_space<vmem>>, vector<1x4x5xf32>
    %119 = vector.shape_cast %118 : vector<1x4x5xf32> to vector<4x5xf32>
    %cst_65 = arith.constant 0.000000e+00 : f32
    %120 = vector.broadcast %cst_65 : f32 to vector<5x512xf32>
    %121 = arith.select %117, %115, %120 : vector<5x512xi1>, vector<5x512xf32>
    %cst_66 = arith.constant dense<0.000000e+00> : vector<4x512xf32>
    %122 = tpu.matmul %119, %121, %cst_66 {dimension_numbers = #tpu.dot_dimension_numbers<[1], [0], [0], [1], [0, 0, 1, 1], [], []>} : vector<4x5xf32>, vector<5x512xf32>, vector<4x512xf32> -> vector<4x512xf32>
    %123 = arith.addf %114, %122 : vector<4x512xf32>
    %c0_67 = arith.constant 0 : index
    %c34 = arith.constant 34 : index
    %124 = vector.load %arg0[%c0_67, %c34] : memref<5x546xf32, #tpu.memory_space<vmem>>, vector<5x512xf32>
    %c240_i32_68 = arith.constant 240 : i32
    %125 = vector.broadcast %c240_i32_68 : i32 to vector<5x512xi32>
    %126 = arith.cmpi slt, %49, %125 : vector<5x512xi32>
    %c15_i32_69 = arith.constant 15 : i32
    %127 = vector.broadcast %c15_i32_69 : i32 to vector<5x512xi32>
    %128 = arith.cmpi slt, %51, %127 : vector<5x512xi32>
    %129 = arith.andi %126, %128 : vector<5x512xi1>
    %c7 = arith.constant 7 : index
    %c0_70 = arith.constant 0 : index
    %c0_71 = arith.constant 0 : index
    %130 = vector.load %arg4[%c7, %c0_70, %c0_71] : memref<8x4x5xf32, #tpu.memory_space<vmem>>, vector<1x4x5xf32>
    %131 = vector.shape_cast %130 : vector<1x4x5xf32> to vector<4x5xf32>
    %cst_72 = arith.constant 0.000000e+00 : f32
    %132 = vector.broadcast %cst_72 : f32 to vector<5x512xf32>
    %133 = arith.select %129, %124, %132 : vector<5x512xi1>, vector<5x512xf32>
    %cst_73 = arith.constant dense<0.000000e+00> : vector<4x512xf32>
    %134 = tpu.matmul %131, %133, %cst_73 {dimension_numbers = #tpu.dot_dimension_numbers<[1], [0], [0], [1], [0, 0, 1, 1], [], []>} : vector<4x5xf32>, vector<5x512xf32>, vector<4x512xf32> -> vector<4x512xf32>
    %135 = arith.addf %123, %134 : vector<4x512xf32>
    %c0_74 = arith.constant 0 : index
    %c0_75 = arith.constant 0 : index
    %136 = vector.load %arg1[%c0_74, %c0_75] : memref<4x512xf32, #tpu.memory_space<vmem>>, vector<4x512xf32>
    %137 = arith.addf %136, %135 : vector<4x512xf32>
    %c0_76 = arith.constant 0 : index
    %c0_77 = arith.constant 0 : index
    %138 = vector.load %arg5[%c0_76, %c0_77] : memref<4x512xf32, #tpu.memory_space<vmem>>, vector<4x512xf32>
    tpu.vector_store %arg5[%c0_76, %c0_77], %137 {strides = array<i32>} : memref<4x512xf32, #tpu.memory_space<vmem>>, vector<4x512xf32>,
    return
  }
}

</mosaic_0001>

<llo_original>
// kernel: reverse.0
$region0: #{reverse.0}
  %s0 = inlined_call_operand.vmem [shape: f32[2,4,16,7], index: 0, kind: input, shape index: {}]
  %s1 = inlined_call_operand.vmem [shape: f32[2,4,16,7], index: 1, kind: output, shape index: {}]
  $region1: #{reverse.0} parent=0
    #allocation0 [shape = 'u8[65536]{0}', space=vmem, size = 0x10000, scoped, tag = 'operand span for operand 0']
    #allocation1 [shape = 'u8[32768]{0}', space=vmem, size = 0x8000, scoped, tag = 'operand span for operand 1']
    %s2 = scalar_lea.vmem [#allocation0], 8
    // Predicated region
    $region2: #{reverse.0} parent=1 // pred_check
      _
    $region3: #{reverse.0} parent=1 // pred_check_branch
      %4 = sbr.rel (0) target = $region5
    $region4: #{reverse.0} parent=1 // pred_region
      // Predicated region
      $region6: #{reverse.0} parent=4 // pred_check
        _
      $region7: #{reverse.0} parent=4 // pred_check_branch
        %6 = sbr.rel (0) target = $region9
      $region8: #{reverse.0} parent=4 // pred_region
        // Predicated region
        $region21: #{reverse.0} parent=8 // pred_check
          _
        $region22: #{reverse.0} parent=8 // pred_check_branch
          %36 = sbr.rel (0) target = $region24
        $region23: #{reverse.0} parent=8 // pred_region
          loop: start=0, step=1, limit=1
          $region25: #{reverse.0} parent=23 // loop_pre_header
            _
          $region26: #{reverse.0} parent=23 // loop_header
            %s38 = sphi 0, %s42
            %p39 = scmp.ge.s32.totalorder %s38, 1
            %s43 = sphi %s0, %s0
            %s44 = sphi %s2, %s2
          $region27: #{reverse.0} parent=23 // loop_header_branch
            %41 = sbr.rel (%p39) target = $region31
          $region28: #{reverse.0} parent=23 // loop_body
            %v45 = vld [vmem:[%s43] sm:$0xff]
            %46 = vst [vmem:[%s44] sm:$0xff] %v45
            %v47 = vld [vmem:[%s43 + $0x8] sm:$0xff]
            %48 = vst [vmem:[%s44 + $0x10] sm:$0xff] %v47
            %v49 = vld [vmem:[%s43 + $0x10] sm:$0xff]
            %50 = vst [vmem:[%s44 + $0x20] sm:$0xff] %v49
            %v51 = vld [vmem:[%s43 + $0x18] sm:$0xff]
            %52 = vst [vmem:[%s44 + $0x30] sm:$0xff] %v51
            %v53 = vld [vmem:[%s43 + $0x20] sm:$0xff]
            %54 = vst [vmem:[%s44 + $0x40] sm:$0xff] %v53
            %v55 = vld [vmem:[%s43 + $0x28] sm:$0xff]
            %56 = vst [vmem:[%s44 + $0x50] sm:$0xff] %v55
            %v57 = vld [vmem:[%s43 + $0x30] sm:$0xff]
            %58 = vst [vmem:[%s44 + $0x60] sm:$0xff] %v57
            %v59 = vld [vmem:[%s43 + $0x38] sm:$0xff]
            %60 = vst [vmem:[%s44 + $0x70] sm:$0xff] %v59
          $region29: #{reverse.0} parent=23 // loop_footer
            %s42 = sadd.s32 1, %s38
          $region30: #{reverse.0} parent=23 // loop_footer_branch
            %37 = sbr.rel target = $region26
          $region31: #{reverse.0} parent=23 // loop_exit
            _
        $region24: #{reverse.0} parent=8 // pred_fallthru
          _
        // Predicated region
        $region32: #{reverse.0} parent=8 // pred_check
          _
        $region33: #{reverse.0} parent=8 // pred_check_branch
          %62 = sbr.rel target = $region35
        $region34: #{reverse.0} parent=8 // pred_region
          _
        $region35: #{reverse.0} parent=8 // pred_fallthru
          _
      $region9: #{reverse.0} parent=4 // pred_fallthru
        _
      // Predicated region
      $region10: #{reverse.0} parent=4 // pred_check
        _
      $region11: #{reverse.0} parent=4 // pred_check_branch
        %8 = sbr.rel target = $region13
      $region12: #{reverse.0} parent=4 // pred_region
        %s10 = ssub.s32 256, 1
        loop: start=0, step=1, limit=1
        $region14: #{reverse.0} parent=12 // loop_pre_header
          _
        $region15: #{reverse.0} parent=12 // loop_header
          %s12 = sphi 0, %s16
          %p13 = scmp.ge.s32.totalorder %s12, 1
          %s17 = sphi %s0, %s0
          %s18 = sphi %s2, %s2
        $region16: #{reverse.0} parent=12 // loop_header_branch
          %15 = sbr.rel (%p13) target = $region20
        $region17: #{reverse.0} parent=12 // loop_body
          %v19 = vld [vmem:[%s17] sm:%s10]
          %20 = vst [vmem:[%s18] sm:%s10] %v19
          %v21 = vld [vmem:[%s17 + $0x8] sm:%s10]
          %22 = vst [vmem:[%s18 + $0x10] sm:%s10] %v21
          %v23 = vld [vmem:[%s17 + $0x10] sm:%s10]
          %24 = vst [vmem:[%s18 + $0x20] sm:%s10] %v23
          %v25 = vld [vmem:[%s17 + $0x18] sm:%s10]
          %26 = vst [vmem:[%s18 + $0x30] sm:%s10] %v25
          %v27 = vld [vmem:[%s17 + $0x20] sm:%s10]
          %28 = vst [vmem:[%s18 + $0x40] sm:%s10] %v27
          %v29 = vld [vmem:[%s17 + $0x28] sm:%s10]
          %30 = vst [vmem:[%s18 + $0x50] sm:%s10] %v29
          %v31 = vld [vmem:[%s17 + $0x30] sm:%s10]
          %32 = vst [vmem:[%s18 + $0x60] sm:%s10] %v31
          %v33 = vld [vmem:[%s17 + $0x38] sm:%s10]
          %34 = vst [vmem:[%s18 + $0x70] sm:%s10] %v33
        $region18: #{reverse.0} parent=12 // loop_footer
          %s16 = sadd.s32 1, %s12
        $region19: #{reverse.0} parent=12 // loop_footer_branch
          %11 = sbr.rel target = $region15
        $region20: #{reverse.0} parent=12 // loop_exit
          _
      $region13: #{reverse.0} parent=4 // pred_fallthru
        _
    $region5: #{reverse.0} parent=1 // pred_fallthru
      _
    %63 = vnop
    %s64 = scalar_lea.vmem [#allocation0], 7
    %v65 = vld [vmem:[%s64] ss:$-1 sm:$0xff]
    %v66 = vrot.slane %v65, 1
    %67 = vst [vmem:[#allocation1] sm:$0xff] %v66
    %s68 = scalar_lea.vmem [#allocation0], 8
    %s69 = scalar_lea.vmem %s68, 7 [#allocation0]
    %v70 = vld [vmem:[%s69] ss:$-1 sm:$0xff]
    %v71 = vrot.slane %v70, 1
    %v72 = vlaneseq
    %v73 = vshrl.u32 %v72, 7
    %vm74 = vcmp.lt.s32.totalorder %v73, 7
    %75 = vst.msk [vmem:[#allocation1] sm:$0xff] %vm74, %v71
    %s76 = scalar_lea.vmem [#allocation1], 8
    %s77 = scalar_lea.vmem [#allocation0], 16
    %s78 = scalar_lea.vmem %s77, 7 [#allocation0]
    %v79 = vld [vmem:[%s78] ss:$-1 sm:$0xff]
    %v80 = vrot.slane %v79, 1
    %81 = vst [vmem:[%s76] sm:$0xff] %v80
    %s82 = scalar_lea.vmem %s77, 8 [#allocation0]
    %s83 = scalar_lea.vmem %s82, 7 [#allocation0]
    %v84 = vld [vmem:[%s83] ss:$-1 sm:$0xff]
    %v85 = vrot.slane %v84, 1
    %v86 = vlaneseq
    %v87 = vshrl.u32 %v86, 7
    %vm88 = vcmp.lt.s32.totalorder %v87, 7
    %89 = vst.msk [vmem:[%s76] sm:$0xff] %vm88, %v85
    %s90 = scalar_lea.vmem [#allocation1], 16
    %s91 = scalar_lea.vmem [#allocation0], 32
    %s92 = scalar_lea.vmem %s91, 7 [#allocation0]
    %v93 = vld [vmem:[%s92] ss:$-1 sm:$0xff]
    %v94 = vrot.slane %v93, 1
    %95 = vst [vmem:[%s90] sm:$0xff] %v94
    %s96 = scalar_lea.vmem %s91, 8 [#allocation0]
    %s97 = scalar_lea.vmem %s96, 7 [#allocation0]
    %v98 = vld [vmem:[%s97] ss:$-1 sm:$0xff]
    %v99 = vrot.slane %v98, 1
    %v100 = vlaneseq
    %v101 = vshrl.u32 %v100, 7
    %vm102 = vcmp.lt.s32.totalorder %v101, 7
    %103 = vst.msk [vmem:[%s90] sm:$0xff] %vm102, %v99
    %s104 = scalar_lea.vmem [#allocation1], 24
    %s105 = scalar_lea.vmem [#allocation0], 48
    %s106 = scalar_lea.vmem %s105, 7 [#allocation0]
    %v107 = vld [vmem:[%s106] ss:$-1 sm:$0xff]
    %v108 = vrot.slane %v107, 1
    %109 = vst [vmem:[%s104] sm:$0xff] %v108
    %s110 = scalar_lea.vmem %s105, 8 [#allocation0]
    %s111 = scalar_lea.vmem %s110, 7 [#allocation0]
    %v112 = vld [vmem:[%s111] ss:$-1 sm:$0xff]
    %v113 = vrot.slane %v112, 1
    %v114 = vlaneseq
    %v115 = vshrl.u32 %v114, 7
    %vm116 = vcmp.lt.s32.totalorder %v115, 7
    %117 = vst.msk [vmem:[%s104] sm:$0xff] %vm116, %v113
    %s118 = scalar_lea.vmem [#allocation1], 32
    %s119 = scalar_lea.vmem [#allocation0], 64
    %s120 = scalar_lea.vmem %s119, 7 [#allocation0]
    %v121 = vld [vmem:[%s120] ss:$-1 sm:$0xff]
    %v122 = vrot.slane %v121, 1
    %123 = vst [vmem:[%s118] sm:$0xff] %v122
    %s124 = scalar_lea.vmem %s119, 8 [#allocation0]
    %s125 = scalar_lea.vmem %s124, 7 [#allocation0]
    %v126 = vld [vmem:[%s125] ss:$-1 sm:$0xff]
    %v127 = vrot.slane %v126, 1
    %v128 = vlaneseq
    %v129 = vshrl.u32 %v128, 7
    %vm130 = vcmp.lt.s32.totalorder %v129, 7
    %131 = vst.msk [vmem:[%s118] sm:$0xff] %vm130, %v127
    %s132 = scalar_lea.vmem [#allocation1], 40
    %s133 = scalar_lea.vmem [#allocation0], 80
    %s134 = scalar_lea.vmem %s133, 7 [#allocation0]
    %v135 = vld [vmem:[%s134] ss:$-1 sm:$0xff]
    %v136 = vrot.slane %v135, 1
    %137 = vst [vmem:[%s132] sm:$0xff] %v136
    %s138 = scalar_lea.vmem %s133, 8 [#allocation0]
    %s139 = scalar_lea.vmem %s138, 7 [#allocation0]
    %v140 = vld [vmem:[%s139] ss:$-1 sm:$0xff]
    %v141 = vrot.slane %v140, 1
    %v142 = vlaneseq
    %v143 = vshrl.u32 %v142, 7
    %vm144 = vcmp.lt.s32.totalorder %v143, 7
    %145 = vst.msk [vmem:[%s132] sm:$0xff] %vm144, %v141
    %s146 = scalar_lea.vmem [#allocation1], 48
    %s147 = scalar_lea.vmem [#allocation0], 96
    %s148 = scalar_lea.vmem %s147, 7 [#allocation0]
    %v149 = vld [vmem:[%s148] ss:$-1 sm:$0xff]
    %v150 = vrot.slane %v149, 1
    %151 = vst [vmem:[%s146] sm:$0xff] %v150
    %s152 = scalar_lea.vmem %s147, 8 [#allocation0]
    %s153 = scalar_lea.vmem %s152, 7 [#allocation0]
    %v154 = vld [vmem:[%s153] ss:$-1 sm:$0xff]
    %v155 = vrot.slane %v154, 1
    %v156 = vlaneseq
    %v157 = vshrl.u32 %v156, 7
    %vm158 = vcmp.lt.s32.totalorder %v157, 7
    %159 = vst.msk [vmem:[%s146] sm:$0xff] %vm158, %v155
    %s160 = scalar_lea.vmem [#allocation1], 56
    %s161 = scalar_lea.vmem [#allocation0], 112
    %s162 = scalar_lea.vmem %s161, 7 [#allocation0]
    %v163 = vld [vmem:[%s162] ss:$-1 sm:$0xff]
    %v164 = vrot.slane %v163, 1
    %165 = vst [vmem:[%s160] sm:$0xff] %v164
    %s166 = scalar_lea.vmem %s161, 8 [#allocation0]
    %s167 = scalar_lea.vmem %s166, 7 [#allocation0]
    %v168 = vld [vmem:[%s167] ss:$-1 sm:$0xff]
    %v169 = vrot.slane %v168, 1
    %v170 = vlaneseq
    %v171 = vshrl.u32 %v170, 7
    %vm172 = vcmp.lt.s32.totalorder %v171, 7
    %173 = vst.msk [vmem:[%s160] sm:$0xff] %vm172, %v169
    // Predicated region
    $region36: #{reverse.0} parent=1 // pred_check
      _
    $region37: #{reverse.0} parent=1 // pred_check_branch
      %175 = sbr.rel (0) target = $region39
    $region38: #{reverse.0} parent=1 // pred_region
      // Predicated region
      $region40: #{reverse.0} parent=38 // pred_check
        _
      $region41: #{reverse.0} parent=38 // pred_check_branch
        %177 = sbr.rel (0) target = $region43
      $region42: #{reverse.0} parent=38 // pred_region
        // Predicated region
        $region55: #{reverse.0} parent=42 // pred_check
          _
        $region56: #{reverse.0} parent=42 // pred_check_branch
          %207 = sbr.rel (0) target = $region58
        $region57: #{reverse.0} parent=42 // pred_region
          loop: start=0, step=1, limit=1
          $region59: #{reverse.0} parent=57 // loop_pre_header
            _
          $region60: #{reverse.0} parent=57 // loop_header
            %s209 = sphi 0, %s213
            %p210 = scmp.ge.s32.totalorder %s209, 1
            %s214 = sphi [#allocation1], [#allocation1]
            %s215 = sphi %s1, %s1
          $region61: #{reverse.0} parent=57 // loop_header_branch
            %212 = sbr.rel (%p210) target = $region65
          $region62: #{reverse.0} parent=57 // loop_body
            %v216 = vld [vmem:[%s214] sm:$0xff]
            %217 = vst [vmem:[%s215] sm:$0xff] %v216
            %v218 = vld [vmem:[%s214 + $0x8] sm:$0xff]
            %219 = vst [vmem:[%s215 + $0x8] sm:$0xff] %v218
            %v220 = vld [vmem:[%s214 + $0x10] sm:$0xff]
            %221 = vst [vmem:[%s215 + $0x10] sm:$0xff] %v220
            %v222 = vld [vmem:[%s214 + $0x18] sm:$0xff]
            %223 = vst [vmem:[%s215 + $0x18] sm:$0xff] %v222
            %v224 = vld [vmem:[%s214 + $0x20] sm:$0xff]
            %225 = vst [vmem:[%s215 + $0x20] sm:$0xff] %v224
            %v226 = vld [vmem:[%s214 + $0x28] sm:$0xff]
            %227 = vst [vmem:[%s215 + $0x28] sm:$0xff] %v226
            %v228 = vld [vmem:[%s214 + $0x30] sm:$0xff]
            %229 = vst [vmem:[%s215 + $0x30] sm:$0xff] %v228
            %v230 = vld [vmem:[%s214 + $0x38] sm:$0xff]
            %231 = vst [vmem:[%s215 + $0x38] sm:$0xff] %v230
          $region63: #{reverse.0} parent=57 // loop_footer
            %s213 = sadd.s32 1, %s209
          $region64: #{reverse.0} parent=57 // loop_footer_branch
            %208 = sbr.rel target = $region60
          $region65: #{reverse.0} parent=57 // loop_exit
            _
        $region58: #{reverse.0} parent=42 // pred_fallthru
          _
        // Predicated region
        $region66: #{reverse.0} parent=42 // pred_check
          _
        $region67: #{reverse.0} parent=42 // pred_check_branch
          %233 = sbr.rel target = $region69
        $region68: #{reverse.0} parent=42 // pred_region
          _
        $region69: #{reverse.0} parent=42 // pred_fallthru
          _
      $region43: #{reverse.0} parent=38 // pred_fallthru
        _
      // Predicated region
      $region44: #{reverse.0} parent=38 // pred_check
        _
      $region45: #{reverse.0} parent=38 // pred_check_branch
        %179 = sbr.rel target = $region47
      $region46: #{reverse.0} parent=38 // pred_region
        %s181 = ssub.s32 256, 1
        loop: start=0, step=1, limit=1
        $region48: #{reverse.0} parent=46 // loop_pre_header
          _
        $region49: #{reverse.0} parent=46 // loop_header
          %s183 = sphi 0, %s187
          %p184 = scmp.ge.s32.totalorder %s183, 1
          %s188 = sphi [#allocation1], [#allocation1]
          %s189 = sphi %s1, %s1
        $region50: #{reverse.0} parent=46 // loop_header_branch
          %186 = sbr.rel (%p184) target = $region54
        $region51: #{reverse.0} parent=46 // loop_body
          %v190 = vld [vmem:[%s188] sm:%s181]
          %191 = vst [vmem:[%s189] sm:%s181] %v190
          %v192 = vld [vmem:[%s188 + $0x8] sm:%s181]
          %193 = vst [vmem:[%s189 + $0x8] sm:%s181] %v192
          %v194 = vld [vmem:[%s188 + $0x10] sm:%s181]
          %195 = vst [vmem:[%s189 + $0x10] sm:%s181] %v194
          %v196 = vld [vmem:[%s188 + $0x18] sm:%s181]
          %197 = vst [vmem:[%s189 + $0x18] sm:%s181] %v196
          %v198 = vld [vmem:[%s188 + $0x20] sm:%s181]
          %199 = vst [vmem:[%s189 + $0x20] sm:%s181] %v198
          %v200 = vld [vmem:[%s188 + $0x28] sm:%s181]
          %201 = vst [vmem:[%s189 + $0x28] sm:%s181] %v200
          %v202 = vld [vmem:[%s188 + $0x30] sm:%s181]
          %203 = vst [vmem:[%s189 + $0x30] sm:%s181] %v202
          %v204 = vld [vmem:[%s188 + $0x38] sm:%s181]
          %205 = vst [vmem:[%s189 + $0x38] sm:%s181] %v204
        $region52: #{reverse.0} parent=46 // loop_footer
          %s187 = sadd.s32 1, %s183
        $region53: #{reverse.0} parent=46 // loop_footer_branch
          %182 = sbr.rel target = $region49
        $region54: #{reverse.0} parent=46 // loop_exit
          _
      $region47: #{reverse.0} parent=38 // pred_fallthru
        _
    $region39: #{reverse.0} parent=1 // pred_fallthru
      _
    %234 = vnop

// kernel: fourier_block_forward.1
$region0: #{fourier_block_forward.1}
  #allocation0 [shape = 'u32[]', space=smem, size = 0x4, offset = 0x4, fixed_abs, tag = 'smem constant byte address 0x4 - core index']
  #allocation1 [shape = 'u32[72,128]{1,0:T(1,128)}', space=vmem, size = 0x9000, scoped, tag = 'internal scratch']
  %s0 = inlined_call_operand.vmem [shape: f32[5,546], index: 0, kind: input, shape index: {}]
  %s1 = inlined_call_operand.vmem [shape: f32[4,512], index: 1, kind: input, shape index: {}]
  %s2 = inlined_call_operand.vmem [shape: f32[32,5], index: 2, kind: input, shape index: {}]
  %s3 = inlined_call_operand.vmem [shape: f32[4,37], index: 3, kind: input, shape index: {}]
  %s4 = inlined_call_operand.vmem [shape: f32[8,4,5], index: 4, kind: input, shape index: {}]
  %s5 = inlined_call_operand.vmem [shape: f32[4,512], index: 5, kind: output, shape index: {}]
  %s6 = sld [smem:[#allocation0]]
  $region30: #{fourier_block_forward.1} parent=0
    _
  %s8 = ssub.s32 1, %s6
  %s9 = scalar_select 0, %s8, %s6
  // Predicated region
  $region2: #{fourier_block_forward.1} parent=0 // pred_check
    _
  $region3: #{fourier_block_forward.1} parent=0 // pred_check_branch
    %11 = sbr.rel (0) target = $region5
  $region4: #{fourier_block_forward.1} parent=0 // pred_region
    _
  $region5: #{fourier_block_forward.1} parent=0 // pred_fallthru
    _
  // Predicated region
  $region6: #{fourier_block_forward.1} parent=0 // pred_check
    _
  $region7: #{fourier_block_forward.1} parent=0 // pred_check_branch
    %13 = sbr.rel (0) target = $region9
  $region8: #{fourier_block_forward.1} parent=0 // pred_region
    _
  $region9: #{fourier_block_forward.1} parent=0 // pred_fallthru
    _
  // Predicated region
  $region10: #{fourier_block_forward.1} parent=0 // pred_check
    _
  $region11: #{fourier_block_forward.1} parent=0 // pred_check_branch
    %15 = sbr.rel (0) target = $region13
  $region12: #{fourier_block_forward.1} parent=0 // pred_region
    _
  $region13: #{fourier_block_forward.1} parent=0 // pred_fallthru
    _
  // Predicated region
  $region14: #{fourier_block_forward.1} parent=0 // pred_check
    _
  $region15: #{fourier_block_forward.1} parent=0 // pred_check_branch
    %17 = sbr.rel (0) target = $region17
  $region16: #{fourier_block_forward.1} parent=0 // pred_region
    _
  $region17: #{fourier_block_forward.1} parent=0 // pred_fallthru
    _
  // Predicated region
  $region18: #{fourier_block_forward.1} parent=0 // pred_check
    _
  $region19: #{fourier_block_forward.1} parent=0 // pred_check_branch
    %19 = sbr.rel (0) target = $region21
  $region20: #{fourier_block_forward.1} parent=0 // pred_region
    _
  $region21: #{fourier_block_forward.1} parent=0 // pred_fallthru
    _
  %v20 = vld [vmem:[%s0] sm:$0x1f]
  %v21 = vld [vmem:[%s0 + $0x8] sm:$0x1f]
  %v22 = vld [vmem:[%s0 + $0x10] sm:$0x1f]
  %v23 = vld [vmem:[%s0 + $0x18] sm:$0x1f]
  %v24 = vld [vmem:[%s0 + $0x20] sm:$0x1f]
  %v25 = vld [vmem:[%s2] sm:$0xff]
  %v26 = vld [vmem:[%s2 + $0x8] sm:$0xff]
  %v27 = vld [vmem:[%s2 + $0x10] sm:$0xff]
  %v28 = vld [vmem:[%s2 + $0x18] sm:$0xff]
  %34 = vrot.lane.b32.xlu0 %v20, 111
  %v35 = vpop.permute.xlu0 %34
  %36 = vrot.lane.b32.xlu0 %v21, 111
  %v37 = vpop.permute.xlu0 %36
  %38 = vrot.lane.b32.xlu0 %v22, 111
  %v39 = vpop.permute.xlu0 %38
  %40 = vrot.lane.b32.xlu0 %v23, 111
  %v41 = vpop.permute.xlu0 %40
  %42 = vrot.lane.b32.xlu0 %v24, 111
  %v43 = vpop.permute.xlu0 %42
  %vm44 = vcmask 908288
  %v45 = vsel %vm44, %v35, %v37
  %v46 = vsel %vm44, %v37, %v39
  %v47 = vsel %vm44, %v39, %v41
  %v48 = vsel %vm44, %v41, %v43
  %vm49 = vcmask 39936
  %v51 = vsel %vm49, %v25, 0
  %v54 = vsel %vm49, %v26, 0
  %v57 = vsel %vm49, %v27, 0
  %v60 = vsel %vm49, %v28, 0
  %vm62 = vcmask 1044480
  %v63 = vsel %vm62, %v45, 0
  %v65 = vsel %vm62, %v46, 0
  %v67 = vsel %vm62, %v47, 0
  %v69 = vsel %vm62, %v48, 0
  %71 = vmatpush.msra.mxu0 0.0
  %72 = vmatpush.msra.mxu0 0.0
  %73 = vmatpush.msra.mxu0 0.0
  %74 = vmatpush.msra.mxu0 0.0
  %75 = vmatpush.msra.mxu0 0.0
  %76 = vmatpush.msra.mxu0 0.0
  %77 = vmatpush.msra.mxu0 0.0
  %78 = vmatpush.msra.mxu0 0.0
  %79 = vmatpush.msra.mxu0 0.0
  %80 = vmatpush.msra.mxu0 0.0
  %81 = vmatpush.msra.mxu0 0.0
  %82 = vmatpush.msra.mxu0 0.0
  %83 = vmatpush.msra.mxu0 0.0
  %84 = vmatpush.msra.mxu0 0.0
  %85 = vmatpush.msra.mxu0 0.0
  %86 = vmatpush.msra.mxu0 %v63
  %87 = vmatmul.f32.gmra.mxu0 %v51
  %v88 = vpop.f32.mrf.mxu0
  %v89 = vadd.f32 0.0, %v88
  %90 = vmatmul.f32.gmra.mxu0 %v54
  %v91 = vpop.f32.mrf.mxu0
  %v92 = vadd.f32 0.0, %v91
  %93 = vmatmul.f32.gmra.mxu0 %v57
  %v94 = vpop.f32.mrf.mxu0
  %v95 = vadd.f32 0.0, %v94
  %96 = vmatmul.f32.gmra.mxu0 %v60
  %v97 = vpop.f32.mrf.mxu0
  %v98 = vadd.f32 0.0, %v97
  %99 = vdwg.mxu0
  %100 = vmatpush.msra.mxu0 0.0
  %101 = vmatpush.msra.mxu0 0.0
  %102 = vmatpush.msra.mxu0 0.0
  %103 = vmatpush.msra.mxu0 0.0
  %104 = vmatpush.msra.mxu0 0.0
  %105 = vmatpush.msra.mxu0 0.0
  %106 = vmatpush.msra.mxu0 0.0
  %107 = vmatpush.msra.mxu0 0.0
  %108 = vmatpush.msra.mxu0 0.0
  %109 = vmatpush.msra.mxu0 0.0
  %110 = vmatpush.msra.mxu0 0.0
  %111 = vmatpush.msra.mxu0 0.0
  %112 = vmatpush.msra.mxu0 0.0
  %113 = vmatpush.msra.mxu0 0.0
  %114 = vmatpush.msra.mxu0 0.0
  %115 = vmatpush.msra.mxu0 %v65
  %116 = vmatmul.f32.gmra.mxu0 %v51
  %v117 = vpop.f32.mrf.mxu0
  %v118 = vadd.f32 0.0, %v117
  %119 = vmatmul.f32.gmra.mxu0 %v54
  %v120 = vpop.f32.mrf.mxu0
  %v121 = vadd.f32 0.0, %v120
  %122 = vmatmul.f32.gmra.mxu0 %v57
  %v123 = vpop.f32.mrf.mxu0
  %v124 = vadd.f32 0.0, %v123
  %125 = vmatmul.f32.gmra.mxu0 %v60
  %v126 = vpop.f32.mrf.mxu0
  %v127 = vadd.f32 0.0, %v126
  %128 = vdwg.mxu0
  %129 = vmatpush.msra.mxu0 0.0
  %130 = vmatpush.msra.mxu0 0.0
  %131 = vmatpush.msra.mxu0 0.0
  %132 = vmatpush.msra.mxu0 0.0
  %133 = vmatpush.msra.mxu0 0.0
  %134 = vmatpush.msra.mxu0 0.0
  %135 = vmatpush.msra.mxu0 0.0
  %136 = vmatpush.msra.mxu0 0.0
  %137 = vmatpush.msra.mxu0 0.0
  %138 = vmatpush.msra.mxu0 0.0
  %139 = vmatpush.msra.mxu0 0.0
  %140 = vmatpush.msra.mxu0 0.0
  %141 = vmatpush.msra.mxu0 0.0
  %142 = vmatpush.msra.mxu0 0.0
  %143 = vmatpush.msra.mxu0 0.0
  %144 = vmatpush.msra.mxu0 %v67
  %145 = vmatmul.f32.gmra.mxu0 %v51
  %v146 = vpop.f32.mrf.mxu0
  %v147 = vadd.f32 0.0, %v146
  %148 = vmatmul.f32.gmra.mxu0 %v54
  %v149 = vpop.f32.mrf.mxu0
  %v150 = vadd.f32 0.0, %v149
  %151 = vmatmul.f32.gmra.mxu0 %v57
  %v152 = vpop.f32.mrf.mxu0
  %v153 = vadd.f32 0.0, %v152
  %154 = vmatmul.f32.gmra.mxu0 %v60
  %v155 = vpop.f32.mrf.mxu0
  %v156 = vadd.f32 0.0, %v155
  %157 = vdwg.mxu0
  %158 = vmatpush.msra.mxu0 0.0
  %159 = vmatpush.msra.mxu0 0.0
  %160 = vmatpush.msra.mxu0 0.0
  %161 = vmatpush.msra.mxu0 0.0
  %162 = vmatpush.msra.mxu0 0.0
  %163 = vmatpush.msra.mxu0 0.0
  %164 = vmatpush.msra.mxu0 0.0
  %165 = vmatpush.msra.mxu0 0.0
  %166 = vmatpush.msra.mxu0 0.0
  %167 = vmatpush.msra.mxu0 0.0
  %168 = vmatpush.msra.mxu0 0.0
  %169 = vmatpush.msra.mxu0 0.0
  %170 = vmatpush.msra.mxu0 0.0
  %171 = vmatpush.msra.mxu0 0.0
  %172 = vmatpush.msra.mxu0 0.0
  %173 = vmatpush.msra.mxu0 %v69
  %174 = vmatmul.f32.gmra.mxu0 %v51
  %v175 = vpop.f32.mrf.mxu0
  %v176 = vadd.f32 0.0, %v175
  %177 = vmatmul.f32.gmra.mxu0 %v54
  %v178 = vpop.f32.mrf.mxu0
  %v179 = vadd.f32 0.0, %v178
  %180 = vmatmul.f32.gmra.mxu0 %v57
  %v181 = vpop.f32.mrf.mxu0
  %v182 = vadd.f32 0.0, %v181
  %183 = vmatmul.f32.gmra.mxu0 %v60
  %v184 = vpop.f32.mrf.mxu0
  %v185 = vadd.f32 0.0, %v184
  %186 = vdwg.mxu0
  %v187 = vmul.f32 %v89, 0.5
  %v188 = vmul.f32 %v118, 0.5
  %v189 = vmul.f32 %v147, 0.5
  %v190 = vmul.f32 %v176, 0.5
  %v191 = vmul.f32 %v92, 0.5
  %v192 = vmul.f32 %v121, 0.5
  %v193 = vmul.f32 %v150, 0.5
  %v194 = vmul.f32 %v179, 0.5
  %v195 = vmul.f32 %v95, 0.5
  %v196 = vmul.f32 %v124, 0.5
  %v197 = vmul.f32 %v153, 0.5
  %v198 = vmul.f32 %v182, 0.5
  %v199 = vmul.f32 %v98, 0.5
  %v200 = vmul.f32 %v127, 0.5
  %v201 = vmul.f32 %v156, 0.5
  %v202 = vmul.f32 %v185, 0.5
  %v203 = vmul.f32 %v89, 0.70710677
  %v204 = vmul.f32 %v118, 0.70710677
  %v205 = vmul.f32 %v147, 0.70710677
  %v206 = vmul.f32 %v176, 0.70710677
  %v207 = vmul.f32 %v92, 0.70710677
  %v208 = vmul.f32 %v121, 0.70710677
  %v209 = vmul.f32 %v150, 0.70710677
  %v210 = vmul.f32 %v179, 0.70710677
  %v211 = vmul.f32 %v95, 0.70710677
  %v212 = vmul.f32 %v124, 0.70710677
  %v213 = vmul.f32 %v153, 0.70710677
  %v214 = vmul.f32 %v182, 0.70710677
  %v215 = vmul.f32 %v98, 0.70710677
  %v216 = vmul.f32 %v127, 0.70710677
  %v217 = vmul.f32 %v156, 0.70710677
  %v218 = vmul.f32 %v185, 0.70710677
  %vm219 = vcmp.ge.f32.partialorder %v203, 0.0
  %vm220 = vcmp.ge.f32.partialorder %v204, 0.0
  %vm221 = vcmp.ge.f32.partialorder %v205, 0.0
  %vm222 = vcmp.ge.f32.partialorder %v206, 0.0
  %vm223 = vcmp.ge.f32.partialorder %v207, 0.0
  %vm224 = vcmp.ge.f32.partialorder %v208, 0.0
  %vm225 = vcmp.ge.f32.partialorder %v209, 0.0
  %vm226 = vcmp.ge.f32.partialorder %v210, 0.0
  %vm227 = vcmp.ge.f32.partialorder %v211, 0.0
  %vm228 = vcmp.ge.f32.partialorder %v212, 0.0
  %vm229 = vcmp.ge.f32.partialorder %v213, 0.0
  %vm230 = vcmp.ge.f32.partialorder %v214, 0.0
  %vm231 = vcmp.ge.f32.partialorder %v215, 0.0
  %vm232 = vcmp.ge.f32.partialorder %v216, 0.0
  %vm233 = vcmp.ge.f32.partialorder %v217, 0.0
  %vm234 = vcmp.ge.f32.partialorder %v218, 0.0
  %v235 = vsel %vm219, 1.0, -1.0
  %v236 = vsel %vm220, 1.0, -1.0
  %v237 = vsel %vm221, 1.0, -1.0
  %v238 = vsel %vm222, 1.0, -1.0
  %v239 = vsel %vm223, 1.0, -1.0
  %v240 = vsel %vm224, 1.0, -1.0
  %v241 = vsel %vm225, 1.0, -1.0
  %v242 = vsel %vm226, 1.0, -1.0
  %v243 = vsel %vm227, 1.0, -1.0
  %v244 = vsel %vm228, 1.0, -1.0
  %v245 = vsel %vm229, 1.0, -1.0
  %v246 = vsel %vm230, 1.0, -1.0
  %v247 = vsel %vm231, 1.0, -1.0
  %v248 = vsel %vm232, 1.0, -1.0
  %v249 = vsel %vm233, 1.0, -1.0
  %v250 = vsel %vm234, 1.0, -1.0
  %v251 = vand.u32 2147483647, %v203
  %v252 = vand.u32 2147483647, %v204
  %v253 = vand.u32 2147483647, %v205
  %v254 = vand.u32 2147483647, %v206
  %v255 = vand.u32 2147483647, %v207
  %v256 = vand.u32 2147483647, %v208
  %v257 = vand.u32 2147483647, %v209
  %v258 = vand.u32 2147483647, %v210
  %v259 = vand.u32 2147483647, %v211
  %v260 = vand.u32 2147483647, %v212
  %v261 = vand.u32 2147483647, %v213
  %v262 = vand.u32 2147483647, %v214
  %v263 = vand.u32 2147483647, %v215
  %v264 = vand.u32 2147483647, %v216
  %v265 = vand.u32 2147483647, %v217
  %v266 = vand.u32 2147483647, %v218
  %v267 = vmul.f32 %v251, 0.3275911
  %v268 = vmul.f32 %v252, 0.3275911
  %v269 = vmul.f32 %v253, 0.3275911
  %v270 = vmul.f32 %v254, 0.3275911
  %v271 = vmul.f32 %v255, 0.3275911
  %v272 = vmul.f32 %v256, 0.3275911
  %v273 = vmul.f32 %v257, 0.3275911
  %v274 = vmul.f32 %v258, 0.3275911
  %v275 = vmul.f32 %v259, 0.3275911
  %v276 = vmul.f32 %v260, 0.3275911
  %v277 = vmul.f32 %v261, 0.3275911
  %v278 = vmul.f32 %v262, 0.3275911
  %v279 = vmul.f32 %v263, 0.3275911
  %v280 = vmul.f32 %v264, 0.3275911
  %v281 = vmul.f32 %v265, 0.3275911
  %v282 = vmul.f32 %v266, 0.3275911
  %v283 = vadd.f32 %v267, 1.0
  %v284 = vadd.f32 %v268, 1.0
  %v285 = vadd.f32 %v269, 1.0
  %v286 = vadd.f32 %v270, 1.0
  %v287 = vadd.f32 %v271, 1.0
  %v288 = vadd.f32 %v272, 1.0
  %v289 = vadd.f32 %v273, 1.0
  %v290 = vadd.f32 %v274, 1.0
  %v291 = vadd.f32 %v275, 1.0
  %v292 = vadd.f32 %v276, 1.0
  %v293 = vadd.f32 %v277, 1.0
  %v294 = vadd.f32 %v278, 1.0
  %v295 = vadd.f32 %v279, 1.0
  %v296 = vadd.f32 %v280, 1.0
  %v297 = vadd.f32 %v281, 1.0
  %v298 = vadd.f32 %v282, 1.0
  %v299 = vrcp.pop %v283
  %v300 = vmul.f32 %v283, %v299
  %v301 = vsub.f32 1.0, %v300
  %v302 = vmul.f32 %v299, %v301
  %v303 = vadd.f32 %v299, %v302
  %vm304 = vweird.f32 %v283
  %vm305 = vweird.f32 %v299
  %vm306 = vmor %vm304, %vm305
  %v307 = vsel %vm306, %v299, %v303
  %v308 = vand.u32 2147483647, %v283
  %vm309 = vcmp.eq.f32.partialorder %v308, 8.507059e+37
  %v310 = vand.u32 %v283, 2147483648
  %v311 = vor.u32 1.1754944e-38, %v310
  %v312 = vsel %vm309, %v311, %v307
  %v313 = vmul.f32 1.0, %v312
  %v314 = vrcp.pop %v284
  %v315 = vmul.f32 %v284, %v314
  %v316 = vsub.f32 1.0, %v315
  %v317 = vmul.f32 %v314, %v316
  %v318 = vadd.f32 %v314, %v317
  %vm319 = vweird.f32 %v284
  %vm320 = vweird.f32 %v314
  %vm321 = vmor %vm319, %vm320
  %v322 = vsel %vm321, %v314, %v318
  %v323 = vand.u32 2147483647, %v284
  %vm324 = vcmp.eq.f32.partialorder %v323, 8.507059e+37
  %v325 = vand.u32 %v284, 2147483648
  %v326 = vor.u32 1.1754944e-38, %v325
  %v327 = vsel %vm324, %v326, %v322
  %v328 = vmul.f32 1.0, %v327
  %v329 = vrcp.pop %v285
  %v330 = vmul.f32 %v285, %v329
  %v331 = vsub.f32 1.0, %v330
  %v332 = vmul.f32 %v329, %v331
  %v333 = vadd.f32 %v329, %v332
  %vm334 = vweird.f32 %v285
  %vm335 = vweird.f32 %v329
  %vm336 = vmor %vm334, %vm335
  %v337 = vsel %vm336, %v329, %v333
  %v338 = vand.u32 2147483647, %v285
  %vm339 = vcmp.eq.f32.partialorder %v338, 8.507059e+37
  %v340 = vand.u32 %v285, 2147483648
  %v341 = vor.u32 1.1754944e-38, %v340
  %v342 = vsel %vm339, %v341, %v337
  %v343 = vmul.f32 1.0, %v342
  %v344 = vrcp.pop %v286
  %v345 = vmul.f32 %v286, %v344
  %v346 = vsub.f32 1.0, %v345
  %v347 = vmul.f32 %v344, %v346
  %v348 = vadd.f32 %v344, %v347
  %vm349 = vweird.f32 %v286
  %vm350 = vweird.f32 %v344
  %vm351 = vmor %vm349, %vm350
  %v352 = vsel %vm351, %v344, %v348
  %v353 = vand.u32 2147483647, %v286
  %vm354 = vcmp.eq.f32.partialorder %v353, 8.507059e+37
  %v355 = vand.u32 %v286, 2147483648
  %v356 = vor.u32 1.1754944e-38, %v355
  %v357 = vsel %vm354, %v356, %v352
  %v358 = vmul.f32 1.0, %v357
  %v359 = vrcp.pop %v287
  %v360 = vmul.f32 %v287, %v359
  %v361 = vsub.f32 1.0, %v360
  %v362 = vmul.f32 %v359, %v361
  %v363 = vadd.f32 %v359, %v362
  %vm364 = vweird.f32 %v287
  %vm365 = vweird.f32 %v359
  %vm366 = vmor %vm364, %vm365
  %v367 = vsel %vm366, %v359, %v363
  %v368 = vand.u32 2147483647, %v287
  %vm369 = vcmp.eq.f32.partialorder %v368, 8.507059e+37
  %v370 = vand.u32 %v287, 2147483648
  %v371 = vor.u32 1.1754944e-38, %v370
  %v372 = vsel %vm369, %v371, %v367
  %v373 = vmul.f32 1.0, %v372
  %v374 = vrcp.pop %v288
  %v375 = vmul.f32 %v288, %v374
  %v376 = vsub.f32 1.0, %v375
  %v377 = vmul.f32 %v374, %v376
  %v378 = vadd.f32 %v374, %v377
  %vm379 = vweird.f32 %v288
  %vm380 = vweird.f32 %v374
  %vm381 = vmor %vm379, %vm380
  %v382 = vsel %vm381, %v374, %v378
  %v383 = vand.u32 2147483647, %v288
  %vm384 = vcmp.eq.f32.partialorder %v383, 8.507059e+37
  %v385 = vand.u32 %v288, 2147483648
  %v386 = vor.u32 1.1754944e-38, %v385
  %v387 = vsel %vm384, %v386, %v382
  %v388 = vmul.f32 1.0, %v387
  %v389 = vrcp.pop %v289
  %v390 = vmul.f32 %v289, %v389
  %v391 = vsub.f32 1.0, %v390
  %v392 = vmul.f32 %v389, %v391
  %v393 = vadd.f32 %v389, %v392
  %vm394 = vweird.f32 %v289
  %vm395 = vweird.f32 %v389
  %vm396 = vmor %vm394, %vm395
  %v397 = vsel %vm396, %v389, %v393
  %v398 = vand.u32 2147483647, %v289
  %vm399 = vcmp.eq.f32.partialorder %v398, 8.507059e+37
  %v400 = vand.u32 %v289, 2147483648
  %v401 = vor.u32 1.1754944e-38, %v400
  %v402 = vsel %vm399, %v401, %v397
  %v403 = vmul.f32 1.0, %v402
  %v404 = vrcp.pop %v290
  %v405 = vmul.f32 %v290, %v404
  %v406 = vsub.f32 1.0, %v405
  %v407 = vmul.f32 %v404, %v406
  %v408 = vadd.f32 %v404, %v407
  %vm409 = vweird.f32 %v290
  %vm410 = vweird.f32 %v404
  %vm411 = vmor %vm409, %vm410
  %v412 = vsel %vm411, %v404, %v408
  %v413 = vand.u32 2147483647, %v290
  %vm414 = vcmp.eq.f32.partialorder %v413, 8.507059e+37
  %v415 = vand.u32 %v290, 2147483648
  %v416 = vor.u32 1.1754944e-38, %v415
  %v417 = vsel %vm414, %v416, %v412
  %v418 = vmul.f32 1.0, %v417
  %v419 = vrcp.pop %v291
  %v420 = vmul.f32 %v291, %v419
  %v421 = vsub.f32 1.0, %v420
  %v422 = vmul.f32 %v419, %v421
  %v423 = vadd.f32 %v419, %v422
  %vm424 = vweird.f32 %v291
  %vm425 = vweird.f32 %v419
  %vm426 = vmor %vm424, %vm425
  %v427 = vsel %vm426, %v419, %v423
  %v428 = vand.u32 2147483647, %v291
  %vm429 = vcmp.eq.f32.partialorder %v428, 8.507059e+37
  %v430 = vand.u32 %v291, 2147483648
  %v431 = vor.u32 1.1754944e-38, %v430
  %v432 = vsel %vm429, %v431, %v427
  %v433 = vmul.f32 1.0, %v432
  %v434 = vrcp.pop %v292
  %v435 = vmul.f32 %v292, %v434
  %v436 = vsub.f32 1.0, %v435
  %v437 = vmul.f32 %v434, %v436
  %v438 = vadd.f32 %v434, %v437
  %vm439 = vweird.f32 %v292
  %vm440 = vweird.f32 %v434
  %vm441 = vmor %vm439, %vm440
  %v442 = vsel %vm441, %v434, %v438
  %v443 = vand.u32 2147483647, %v292
  %vm444 = vcmp.eq.f32.partialorder %v443, 8.507059e+37
  %v445 = vand.u32 %v292, 2147483648
  %v446 = vor.u32 1.1754944e-38, %v445
  %v447 = vsel %vm444, %v446, %v442
  %v448 = vmul.f32 1.0, %v447
  %v449 = vrcp.pop %v293
  %v450 = vmul.f32 %v293, %v449
  %v451 = vsub.f32 1.0, %v450
  %v452 = vmul.f32 %v449, %v451
  %v453 = vadd.f32 %v449, %v452
  %vm454 = vweird.f32 %v293
  %vm455 = vweird.f32 %v449
  %vm456 = vmor %vm454, %vm455
  %v457 = vsel %vm456, %v449, %v453
  %v458 = vand.u32 2147483647, %v293
  %vm459 = vcmp.eq.f32.partialorder %v458, 8.507059e+37
  %v460 = vand.u32 %v293, 2147483648
  %v461 = vor.u32 1.1754944e-38, %v460
  %v462 = vsel %vm459, %v461, %v457
  %v463 = vmul.f32 1.0, %v462
  %v464 = vrcp.pop %v294
  %v465 = vmul.f32 %v294, %v464
  %v466 = vsub.f32 1.0, %v465
  %v467 = vmul.f32 %v464, %v466
  %v468 = vadd.f32 %v464, %v467
  %vm469 = vweird.f32 %v294
  %vm470 = vweird.f32 %v464
  %vm471 = vmor %vm469, %vm470
  %v472 = vsel %vm471, %v464, %v468
  %v473 = vand.u32 2147483647, %v294
  %vm474 = vcmp.eq.f32.partialorder %v473, 8.507059e+37
  %v475 = vand.u32 %v294, 2147483648
  %v476 = vor.u32 1.1754944e-38, %v475
  %v477 = vsel %vm474, %v476, %v472
  %v478 = vmul.f32 1.0, %v477
  %v479 = vrcp.pop %v295
  %v480 = vmul.f32 %v295, %v479
  %v481 = vsub.f32 1.0, %v480
  %v482 = vmul.f32 %v479, %v481
  %v483 = vadd.f32 %v479, %v482
  %vm484 = vweird.f32 %v295
  %vm485 = vweird.f32 %v479
  %vm486 = vmor %vm484, %vm485
  %v487 = vsel %vm486, %v479, %v483
  %v488 = vand.u32 2147483647, %v295
  %vm489 = vcmp.eq.f32.partialorder %v488, 8.507059e+37
  %v490 = vand.u32 %v295, 2147483648
  %v491 = vor.u32 1.1754944e-38, %v490
  %v492 = vsel %vm489, %v491, %v487
  %v493 = vmul.f32 1.0, %v492
  %v494 = vrcp.pop %v296
  %v495 = vmul.f32 %v296, %v494
  %v496 = vsub.f32 1.0, %v495
  %v497 = vmul.f32 %v494, %v496
  %v498 = vadd.f32 %v494, %v497
  %vm499 = vweird.f32 %v296
  %vm500 = vweird.f32 %v494
  %vm501 = vmor %vm499, %vm500
  %v502 = vsel %vm501, %v494, %v498
  %v503 = vand.u32 2147483647, %v296
  %vm504 = vcmp.eq.f32.partialorder %v503, 8.507059e+37
  %v505 = vand.u32 %v296, 2147483648
  %v506 = vor.u32 1.1754944e-38, %v505
  %v507 = vsel %vm504, %v506, %v502
  %v508 = vmul.f32 1.0, %v507
  %v509 = vrcp.pop %v297
  %v510 = vmul.f32 %v297, %v509
  %v511 = vsub.f32 1.0, %v510
  %v512 = vmul.f32 %v509, %v511
  %v513 = vadd.f32 %v509, %v512
  %vm514 = vweird.f32 %v297
  %vm515 = vweird.f32 %v509
  %vm516 = vmor %vm514, %vm515
  %v517 = vsel %vm516, %v509, %v513
  %v518 = vand.u32 2147483647, %v297
  %vm519 = vcmp.eq.f32.partialorder %v518, 8.507059e+37
  %v520 = vand.u32 %v297, 2147483648
  %v521 = vor.u32 1.1754944e-38, %v520
  %v522 = vsel %vm519, %v521, %v517
  %v523 = vmul.f32 1.0, %v522
  %v524 = vrcp.pop %v298
  %v525 = vmul.f32 %v298, %v524
  %v526 = vsub.f32 1.0, %v525
  %v527 = vmul.f32 %v524, %v526
  %v528 = vadd.f32 %v524, %v527
  %vm529 = vweird.f32 %v298
  %vm530 = vweird.f32 %v524
  %vm531 = vmor %vm529, %vm530
  %v532 = vsel %vm531, %v524, %v528
  %v533 = vand.u32 2147483647, %v298
  %vm534 = vcmp.eq.f32.partialorder %v533, 8.507059e+37
  %v535 = vand.u32 %v298, 2147483648
  %v536 = vor.u32 1.1754944e-38, %v535
  %v537 = vsel %vm534, %v536, %v532
  %v538 = vmul.f32 1.0, %v537
  %v539 = vmul.f32 %v313, 1.0614054
  %v540 = vmul.f32 %v328, 1.0614054
  %v541 = vmul.f32 %v343, 1.0614054
  %v542 = vmul.f32 %v358, 1.0614054
  %v543 = vmul.f32 %v373, 1.0614054
  %v544 = vmul.f32 %v388, 1.0614054
  %v545 = vmul.f32 %v403, 1.0614054
  %v546 = vmul.f32 %v418, 1.0614054
  %v547 = vmul.f32 %v433, 1.0614054
  %v548 = vmul.f32 %v448, 1.0614054
  %v549 = vmul.f32 %v463, 1.0614054
  %v550 = vmul.f32 %v478, 1.0614054
  %v551 = vmul.f32 %v493, 1.0614054
  %v552 = vmul.f32 %v508, 1.0614054
  %v553 = vmul.f32 %v523, 1.0614054
  %v554 = vmul.f32 %v538, 1.0614054
  %v555 = vadd.f32 %v539, -1.4531521
  %v556 = vadd.f32 %v540, -1.4531521
  %v557 = vadd.f32 %v541, -1.4531521
  %v558 = vadd.f32 %v542, -1.4531521
  %v559 = vadd.f32 %v543, -1.4531521
  %v560 = vadd.f32 %v544, -1.4531521
  %v561 = vadd.f32 %v545, -1.4531521
  %v562 = vadd.f32 %v546, -1.4531521
  %v563 = vadd.f32 %v547, -1.4531521
  %v564 = vadd.f32 %v548, -1.4531521
  %v565 = vadd.f32 %v549, -1.4531521
  %v566 = vadd.f32 %v550, -1.4531521
  %v567 = vadd.f32 %v551, -1.4531521
  %v568 = vadd.f32 %v552, -1.4531521
  %v569 = vadd.f32 %v553, -1.4531521
  %v570 = vadd.f32 %v554, -1.4531521
  %v571 = vmul.f32 %v555, %v313
  %v572 = vmul.f32 %v556, %v328
  %v573 = vmul.f32 %v557, %v343
  %v574 = vmul.f32 %v558, %v358
  %v575 = vmul.f32 %v559, %v373
  %v576 = vmul.f32 %v560, %v388
  %v577 = vmul.f32 %v561, %v403
  %v578 = vmul.f32 %v562, %v418
  %v579 = vmul.f32 %v563, %v433
  %v580 = vmul.f32 %v564, %v448
  %v581 = vmul.f32 %v565, %v463
  %v582 = vmul.f32 %v566, %v478
  %v583 = vmul.f32 %v567, %v493
  %v584 = vmul.f32 %v568, %v508
  %v585 = vmul.f32 %v569, %v523
  %v586 = vmul.f32 %v570, %v538
  %v587 = vadd.f32 %v571, 1.4214138
  %v588 = vadd.f32 %v572, 1.4214138
  %v589 = vadd.f32 %v573, 1.4214138
  %v590 = vadd.f32 %v574, 1.4214138
  %v591 = vadd.f32 %v575, 1.4214138
  %v592 = vadd.f32 %v576, 1.4214138
  %v593 = vadd.f32 %v577, 1.4214138
  %v594 = vadd.f32 %v578, 1.4214138
  %v595 = vadd.f32 %v579, 1.4214138
  %v596 = vadd.f32 %v580, 1.4214138
  %v597 = vadd.f32 %v581, 1.4214138
  %v598 = vadd.f32 %v582, 1.4214138
  %v599 = vadd.f32 %v583, 1.4214138
  %v600 = vadd.f32 %v584, 1.4214138
  %v601 = vadd.f32 %v585, 1.4214138
  %v602 = vadd.f32 %v586, 1.4214138
  %v603 = vmul.f32 %v587, %v313
  %v604 = vmul.f32 %v588, %v328
  %v605 = vmul.f32 %v589, %v343
  %v606 = vmul.f32 %v590, %v358
  %v607 = vmul.f32 %v591, %v373
  %v608 = vmul.f32 %v592, %v388
  %v609 = vmul.f32 %v593, %v403
  %v610 = vmul.f32 %v594, %v418
  %v611 = vmul.f32 %v595, %v433
  %v612 = vmul.f32 %v596, %v448
  %v613 = vmul.f32 %v597, %v463
  %v614 = vmul.f32 %v598, %v478
  %v615 = vmul.f32 %v599, %v493
  %v616 = vmul.f32 %v600, %v508
  %v617 = vmul.f32 %v601, %v523
  %v618 = vmul.f32 %v602, %v538
  %v619 = vadd.f32 %v603, -0.28449672
  %v620 = vadd.f32 %v604, -0.28449672
  %v621 = vadd.f32 %v605, -0.28449672
  %v622 = vadd.f32 %v606, -0.28449672
  %v623 = vadd.f32 %v607, -0.28449672
  %v624 = vadd.f32 %v608, -0.28449672
  %v625 = vadd.f32 %v609, -0.28449672
  %v626 = vadd.f32 %v610, -0.28449672
  %v627 = vadd.f32 %v611, -0.28449672
  %v628 = vadd.f32 %v612, -0.28449672
  %v629 = vadd.f32 %v613, -0.28449672
  %v630 = vadd.f32 %v614, -0.28449672
  %v631 = vadd.f32 %v615, -0.28449672
  %v632 = vadd.f32 %v616, -0.28449672
  %v633 = vadd.f32 %v617, -0.28449672
  %v634 = vadd.f32 %v618, -0.28449672
  %v635 = vmul.f32 %v619, %v313
  %v636 = vmul.f32 %v620, %v328
  %v637 = vmul.f32 %v621, %v343
  %v638 = vmul.f32 %v622, %v358
  %v639 = vmul.f32 %v623, %v373
  %v640 = vmul.f32 %v624, %v388
  %v641 = vmul.f32 %v625, %v403
  %v642 = vmul.f32 %v626, %v418
  %v643 = vmul.f32 %v627, %v433
  %v644 = vmul.f32 %v628, %v448
  %v645 = vmul.f32 %v629, %v463
  %v646 = vmul.f32 %v630, %v478
  %v647 = vmul.f32 %v631, %v493
  %v648 = vmul.f32 %v632, %v508
  %v649 = vmul.f32 %v633, %v523
  %v650 = vmul.f32 %v634, %v538
  %v651 = vadd.f32 %v635, 0.2548296
  %v652 = vadd.f32 %v636, 0.2548296
  %v653 = vadd.f32 %v637, 0.2548296
  %v654 = vadd.f32 %v638, 0.2548296
  %v655 = vadd.f32 %v639, 0.2548296
  %v656 = vadd.f32 %v640, 0.2548296
  %v657 = vadd.f32 %v641, 0.2548296
  %v658 = vadd.f32 %v642, 0.2548296
  %v659 = vadd.f32 %v643, 0.2548296
  %v660 = vadd.f32 %v644, 0.2548296
  %v661 = vadd.f32 %v645, 0.2548296
  %v662 = vadd.f32 %v646, 0.2548296
  %v663 = vadd.f32 %v647, 0.2548296
  %v664 = vadd.f32 %v648, 0.2548296
  %v665 = vadd.f32 %v649, 0.2548296
  %v666 = vadd.f32 %v650, 0.2548296
  %v667 = vmul.f32 %v651, %v313
  %v668 = vmul.f32 %v652, %v328
  %v669 = vmul.f32 %v653, %v343
  %v670 = vmul.f32 %v654, %v358
  %v671 = vmul.f32 %v655, %v373
  %v672 = vmul.f32 %v656, %v388
  %v673 = vmul.f32 %v657, %v403
  %v674 = vmul.f32 %v658, %v418
  %v675 = vmul.f32 %v659, %v433
  %v676 = vmul.f32 %v660, %v448
  %v677 = vmul.f32 %v661, %v463
  %v678 = vmul.f32 %v662, %v478
  %v679 = vmul.f32 %v663, %v493
  %v680 = vmul.f32 %v664, %v508
  %v681 = vmul.f32 %v665, %v523
  %v682 = vmul.f32 %v666, %v538
  %v683 = vsub.f32 0.0, %v251
  %v684 = vsub.f32 0.0, %v252
  %v685 = vsub.f32 0.0, %v253
  %v686 = vsub.f32 0.0, %v254
  %v687 = vsub.f32 0.0, %v255
  %v688 = vsub.f32 0.0, %v256
  %v689 = vsub.f32 0.0, %v257
  %v690 = vsub.f32 0.0, %v258
  %v691 = vsub.f32 0.0, %v259
  %v692 = vsub.f32 0.0, %v260
  %v693 = vsub.f32 0.0, %v261
  %v694 = vsub.f32 0.0, %v262
  %v695 = vsub.f32 0.0, %v263
  %v696 = vsub.f32 0.0, %v264
  %v697 = vsub.f32 0.0, %v265
  %v698 = vsub.f32 0.0, %v266
  %v699 = vmul.f32 %v683, %v251
  %v700 = vmul.f32 %v684, %v252
  %v701 = vmul.f32 %v685, %v253
  %v702 = vmul.f32 %v686, %v254
  %v703 = vmul.f32 %v687, %v255
  %v704 = vmul.f32 %v688, %v256
  %v705 = vmul.f32 %v689, %v257
  %v706 = vmul.f32 %v690, %v258
  %v707 = vmul.f32 %v691, %v259
  %v708 = vmul.f32 %v692, %v260
  %v709 = vmul.f32 %v693, %v261
  %v710 = vmul.f32 %v694, %v262
  %v711 = vmul.f32 %v695, %v263
  %v712 = vmul.f32 %v696, %v264
  %v713 = vmul.f32 %v697, %v265
  %v714 = vmul.f32 %v698, %v266
  %v715 = vmul.f32 %v699, 1.442695
  %v716 = vpow.pop %v715
  %v717 = vmul.f32 %v700, 1.442695
  %v718 = vpow.pop %v717
  %v719 = vmul.f32 %v701, 1.442695
  %v720 = vpow.pop %v719
  %v721 = vmul.f32 %v702, 1.442695
  %v722 = vpow.pop %v721
  %v723 = vmul.f32 %v703, 1.442695
  %v724 = vpow.pop %v723
  %v725 = vmul.f32 %v704, 1.442695
  %v726 = vpow.pop %v725
  %v727 = vmul.f32 %v705, 1.442695
  %v728 = vpow.pop %v727
  %v729 = vmul.f32 %v706, 1.442695
  %v730 = vpow.pop %v729
  %v731 = vmul.f32 %v707, 1.442695
  %v732 = vpow.pop %v731
  %v733 = vmul.f32 %v708, 1.442695
  %v734 = vpow.pop %v733
  %v735 = vmul.f32 %v709, 1.442695
  %v736 = vpow.pop %v735
  %v737 = vmul.f32 %v710, 1.442695
  %v738 = vpow.pop %v737
  %v739 = vmul.f32 %v711, 1.442695
  %v740 = vpow.pop %v739
  %v741 = vmul.f32 %v712, 1.442695
  %v742 = vpow.pop %v741
  %v743 = vmul.f32 %v713, 1.442695
  %v744 = vpow.pop %v743
  %v745 = vmul.f32 %v714, 1.442695
  %v746 = vpow.pop %v745
  %v747 = vmul.f32 %v667, %v716
  %v748 = vmul.f32 %v668, %v718
  %v749 = vmul.f32 %v669, %v720
  %v750 = vmul.f32 %v670, %v722
  %v751 = vmul.f32 %v671, %v724
  %v752 = vmul.f32 %v672, %v726
  %v753 = vmul.f32 %v673, %v728
  %v754 = vmul.f32 %v674, %v730
  %v755 = vmul.f32 %v675, %v732
  %v756 = vmul.f32 %v676, %v734
  %v757 = vmul.f32 %v677, %v736
  %v758 = vmul.f32 %v678, %v738
  %v759 = vmul.f32 %v679, %v740
  %v760 = vmul.f32 %v680, %v742
  %v761 = vmul.f32 %v681, %v744
  %v762 = vmul.f32 %v682, %v746
  %v763 = vsub.f32 1.0, %v747
  %v764 = vsub.f32 1.0, %v748
  %v765 = vsub.f32 1.0, %v749
  %v766 = vsub.f32 1.0, %v750
  %v767 = vsub.f32 1.0, %v751
  %v768 = vsub.f32 1.0, %v752
  %v769 = vsub.f32 1.0, %v753
  %v770 = vsub.f32 1.0, %v754
  %v771 = vsub.f32 1.0, %v755
  %v772 = vsub.f32 1.0, %v756
  %v773 = vsub.f32 1.0, %v757
  %v774 = vsub.f32 1.0, %v758
  %v775 = vsub.f32 1.0, %v759
  %v776 = vsub.f32 1.0, %v760
  %v777 = vsub.f32 1.0, %v761
  %v778 = vsub.f32 1.0, %v762
  %v779 = vmul.f32 %v235, %v763
  %v780 = vmul.f32 %v236, %v764
  %v781 = vmul.f32 %v237, %v765
  %v782 = vmul.f32 %v238, %v766
  %v783 = vmul.f32 %v239, %v767
  %v784 = vmul.f32 %v240, %v768
  %v785 = vmul.f32 %v241, %v769
  %v786 = vmul.f32 %v242, %v770
  %v787 = vmul.f32 %v243, %v771
  %v788 = vmul.f32 %v244, %v772
  %v789 = vmul.f32 %v245, %v773
  %v790 = vmul.f32 %v246, %v774
  %v791 = vmul.f32 %v247, %v775
  %v792 = vmul.f32 %v248, %v776
  %v793 = vmul.f32 %v249, %v777
  %v794 = vmul.f32 %v250, %v778
  %v795 = vadd.f32 %v779, 1.0
  %v796 = vadd.f32 %v780, 1.0
  %v797 = vadd.f32 %v781, 1.0
  %v798 = vadd.f32 %v782, 1.0
  %v799 = vadd.f32 %v783, 1.0
  %v800 = vadd.f32 %v784, 1.0
  %v801 = vadd.f32 %v785, 1.0
  %v802 = vadd.f32 %v786, 1.0
  %v803 = vadd.f32 %v787, 1.0
  %v804 = vadd.f32 %v788, 1.0
  %v805 = vadd.f32 %v789, 1.0
  %v806 = vadd.f32 %v790, 1.0
  %v807 = vadd.f32 %v791, 1.0
  %v808 = vadd.f32 %v792, 1.0
  %v809 = vadd.f32 %v793, 1.0
  %v810 = vadd.f32 %v794, 1.0
  %v811 = vmul.f32 %v187, %v795
  %v812 = vmul.f32 %v188, %v796
  %v813 = vmul.f32 %v189, %v797
  %v814 = vmul.f32 %v190, %v798
  %v815 = vmul.f32 %v191, %v799
  %v816 = vmul.f32 %v192, %v800
  %v817 = vmul.f32 %v193, %v801
  %v818 = vmul.f32 %v194, %v802
  %v819 = vmul.f32 %v195, %v803
  %v820 = vmul.f32 %v196, %v804
  %v821 = vmul.f32 %v197, %v805
  %v822 = vmul.f32 %v198, %v806
  %v823 = vmul.f32 %v199, %v807
  %v824 = vmul.f32 %v200, %v808
  %v825 = vmul.f32 %v201, %v809
  %v826 = vmul.f32 %v202, %v810
  %v827 = vld [vmem:[%s3] sm:$0xf]
  %v828 = vlaneseq
  %v829 = vand.u32 %v828, 127
  %v830 = vadd.s32 %v829, 128
  %v831 = vadd.s32 %v829, 256
  %v832 = vadd.s32 %v829, 384
  %v833 = vand.u32 %v829, 255
  %v834 = vand.u32 %v830, 255
  %v835 = vand.u32 %v831, 255
  %v836 = vand.u32 %v832, 255
  %v837 = vand.u32 %v829, 15
  %v838 = vand.u32 %v830, 15
  %v839 = vand.u32 %v831, 15
  %v840 = vand.u32 %v832, 15
  %v841 = vld [vmem:[%s0] sm:$0x1f]
  %v842 = vld [vmem:[%s0 + $0x8] sm:$0x1f]
  %v843 = vld [vmem:[%s0 + $0x10] sm:$0x1f]
  %v844 = vld [vmem:[%s0 + $0x18] sm:$0x1f]
  %vm845 = vcmp.ge.s32.totalorder %v833, 16
  %vm846 = vcmp.ge.s32.totalorder %v834, 16
  %vm847 = vcmp.ge.s32.totalorder %v835, 16
  %vm848 = vcmp.ge.s32.totalorder %v836, 16
  %vm849 = vcmp.ge.s32.totalorder %v837, 1
  %vm850 = vcmp.ge.s32.totalorder %v838, 1
  %vm851 = vcmp.ge.s32.totalorder %v839, 1
  %vm852 = vcmp.ge.s32.totalorder %v840, 1
  %vm853 = vmand %vm845, %vm849
  %vm854 = vmand %vm846, %vm850
  %vm855 = vmand %vm847, %vm851
  %vm856 = vmand %vm848, %vm852
  %v857 = vld [vmem:[%s4] sm:$0xf]
  %v858 = vsel %vm853, %v841, 0.0
  %v859 = vsel %vm854, %v842, 0.0
  %v860 = vsel %vm855, %v843, 0.0
  %v861 = vsel %vm856, %v844, 0.0
  %v863 = vsel %vm49, %v857, 0
  %v866 = vsel %vm62, %v858, 0
  %v869 = vsel %vm62, %v859, 0
  %v872 = vsel %vm62, %v860, 0
  %v875 = vsel %vm62, %v861, 0
  %877 = vmatpush.msra.mxu0 0.0
  %878 = vmatpush.msra.mxu0 0.0
  %879 = vmatpush.msra.mxu0 0.0
  %880 = vmatpush.msra.mxu0 0.0
  %881 = vmatpush.msra.mxu0 0.0
  %882 = vmatpush.msra.mxu0 0.0
  %883 = vmatpush.msra.mxu0 0.0
  %884 = vmatpush.msra.mxu0 0.0
  %885 = vmatpush.msra.mxu0 0.0
  %886 = vmatpush.msra.mxu0 0.0
  %887 = vmatpush.msra.mxu0 0.0
  %888 = vmatpush.msra.mxu0 0.0
  %889 = vmatpush.msra.mxu0 0.0
  %890 = vmatpush.msra.mxu0 0.0
  %891 = vmatpush.msra.mxu0 0.0
  %892 = vmatpush.msra.mxu0 %v866
  %893 = vmatmul.f32.gmra.mxu0 %v863
  %v894 = vpop.f32.mrf.mxu0
  %v895 = vadd.f32 0.0, %v894
  %896 = vdwg.mxu0
  %897 = vmatpush.msra.mxu0 0.0
  %898 = vmatpush.msra.mxu0 0.0
  %899 = vmatpush.msra.mxu0 0.0
  %900 = vmatpush.msra.mxu0 0.0
  %901 = vmatpush.msra.mxu0 0.0
  %902 = vmatpush.msra.mxu0 0.0
  %903 = vmatpush.msra.mxu0 0.0
  %904 = vmatpush.msra.mxu0 0.0
  %905 = vmatpush.msra.mxu0 0.0
  %906 = vmatpush.msra.mxu0 0.0
  %907 = vmatpush.msra.mxu0 0.0
  %908 = vmatpush.msra.mxu0 0.0
  %909 = vmatpush.msra.mxu0 0.0
  %910 = vmatpush.msra.mxu0 0.0
  %911 = vmatpush.msra.mxu0 0.0
  %912 = vmatpush.msra.mxu0 %v869
  %913 = vmatmul.f32.gmra.mxu0 %v863
  %v914 = vpop.f32.mrf.mxu0
  %v915 = vadd.f32 0.0, %v914
  %916 = vdwg.mxu0
  %917 = vmatpush.msra.mxu0 0.0
  %918 = vmatpush.msra.mxu0 0.0
  %919 = vmatpush.msra.mxu0 0.0
  %920 = vmatpush.msra.mxu0 0.0
  %921 = vmatpush.msra.mxu0 0.0
  %922 = vmatpush.msra.mxu0 0.0
  %923 = vmatpush.msra.mxu0 0.0
  %924 = vmatpush.msra.mxu0 0.0
  %925 = vmatpush.msra.mxu0 0.0
  %926 = vmatpush.msra.mxu0 0.0
  %927 = vmatpush.msra.mxu0 0.0
  %928 = vmatpush.msra.mxu0 0.0
  %929 = vmatpush.msra.mxu0 0.0
  %930 = vmatpush.msra.mxu0 0.0
  %931 = vmatpush.msra.mxu0 0.0
  %932 = vmatpush.msra.mxu0 %v872
  %933 = vmatmul.f32.gmra.mxu0 %v863
  %v934 = vpop.f32.mrf.mxu0
  %v935 = vadd.f32 0.0, %v934
  %936 = vdwg.mxu0
  %937 = vmatpush.msra.mxu0 0.0
  %938 = vmatpush.msra.mxu0 0.0
  %939 = vmatpush.msra.mxu0 0.0
  %940 = vmatpush.msra.mxu0 0.0
  %941 = vmatpush.msra.mxu0 0.0
  %942 = vmatpush.msra.mxu0 0.0
  %943 = vmatpush.msra.mxu0 0.0
  %944 = vmatpush.msra.mxu0 0.0
  %945 = vmatpush.msra.mxu0 0.0
  %946 = vmatpush.msra.mxu0 0.0
  %947 = vmatpush.msra.mxu0 0.0
  %948 = vmatpush.msra.mxu0 0.0
  %949 = vmatpush.msra.mxu0 0.0
  %950 = vmatpush.msra.mxu0 0.0
  %951 = vmatpush.msra.mxu0 0.0
  %952 = vmatpush.msra.mxu0 %v875
  %953 = vmatmul.f32.gmra.mxu0 %v863
  %v954 = vpop.f32.mrf.mxu0
  %v955 = vadd.f32 0.0, %v954
  %956 = vdwg.mxu0
  %vm957 = vcmask 302080
  %v959 = vsel %vm957, %v827, 0
  %961 = vmatpush.msra.mxu0 0.0
  %962 = vmatpush.msra.mxu0 0.0
  %963 = vmatpush.msra.mxu0 0.0
  %964 = vmatpush.msra.mxu0 0.0
  %965 = vmatpush.msra.mxu0 0.0
  %966 = vmatpush.msra.mxu0 0.0
  %967 = vmatpush.msra.mxu0 0.0
  %968 = vmatpush.msra.mxu0 0.0
  %969 = vmatpush.msra.mxu0 0.0
  %970 = vmatpush.msra.mxu0 0.0
  %971 = vmatpush.msra.mxu0 0.0
  %972 = vmatpush.msra.mxu0 %v63
  %973 = vmatpush.msra.mxu0 %v823
  %974 = vmatpush.msra.mxu0 %v819
  %975 = vmatpush.msra.mxu0 %v815
  %976 = vmatpush.msra.mxu0 %v811
  %977 = vmatmul.f32.gmra.mxu0 %v959
  %v978 = vpop.f32.mrf.mxu0
  %v979 = vadd.f32 %v895, %v978
  %980 = vdwg.mxu0
  %981 = vmatpush.msra.mxu0 0.0
  %982 = vmatpush.msra.mxu0 0.0
  %983 = vmatpush.msra.mxu0 0.0
  %984 = vmatpush.msra.mxu0 0.0
  %985 = vmatpush.msra.mxu0 0.0
  %986 = vmatpush.msra.mxu0 0.0
  %987 = vmatpush.msra.mxu0 0.0
  %988 = vmatpush.msra.mxu0 0.0
  %989 = vmatpush.msra.mxu0 0.0
  %990 = vmatpush.msra.mxu0 0.0
  %991 = vmatpush.msra.mxu0 0.0
  %992 = vmatpush.msra.mxu0 %v65
  %993 = vmatpush.msra.mxu0 %v824
  %994 = vmatpush.msra.mxu0 %v820
  %995 = vmatpush.msra.mxu0 %v816
  %996 = vmatpush.msra.mxu0 %v812
  %997 = vmatmul.f32.gmra.mxu0 %v959
  %v998 = vpop.f32.mrf.mxu0
  %v999 = vadd.f32 %v915, %v998
  %1000 = vdwg.mxu0
  %1001 = vmatpush.msra.mxu0 0.0
  %1002 = vmatpush.msra.mxu0 0.0
  %1003 = vmatpush.msra.mxu0 0.0
  %1004 = vmatpush.msra.mxu0 0.0
  %1005 = vmatpush.msra.mxu0 0.0
  %1006 = vmatpush.msra.mxu0 0.0
  %1007 = vmatpush.msra.mxu0 0.0
  %1008 = vmatpush.msra.mxu0 0.0
  %1009 = vmatpush.msra.mxu0 0.0
  %1010 = vmatpush.msra.mxu0 0.0
  %1011 = vmatpush.msra.mxu0 0.0
  %1012 = vmatpush.msra.mxu0 %v67
  %1013 = vmatpush.msra.mxu0 %v825
  %1014 = vmatpush.msra.mxu0 %v821
  %1015 = vmatpush.msra.mxu0 %v817
  %1016 = vmatpush.msra.mxu0 %v813
  %1017 = vmatmul.f32.gmra.mxu0 %v959
  %v1018 = vpop.f32.mrf.mxu0
  %v1019 = vadd.f32 %v935, %v1018
  %1020 = vdwg.mxu0
  %1021 = vmatpush.msra.mxu0 0.0
  %1022 = vmatpush.msra.mxu0 0.0
  %1023 = vmatpush.msra.mxu0 0.0
  %1024 = vmatpush.msra.mxu0 0.0
  %1025 = vmatpush.msra.mxu0 0.0
  %1026 = vmatpush.msra.mxu0 0.0
  %1027 = vmatpush.msra.mxu0 0.0
  %1028 = vmatpush.msra.mxu0 0.0
  %1029 = vmatpush.msra.mxu0 0.0
  %1030 = vmatpush.msra.mxu0 0.0
  %1031 = vmatpush.msra.mxu0 0.0
  %1032 = vmatpush.msra.mxu0 %v69
  %1033 = vmatpush.msra.mxu0 %v826
  %1034 = vmatpush.msra.mxu0 %v822
  %1035 = vmatpush.msra.mxu0 %v818
  %1036 = vmatpush.msra.mxu0 %v814
  %1037 = vmatmul.f32.gmra.mxu0 %v959
  %v1038 = vpop.f32.mrf.mxu0
  %v1039 = vadd.f32 %v955, %v1038
  %1040 = vdwg.mxu0
  %s1041 = scalar_lea.vmem %s4, 4
  %v1042 = vld [vmem:[%s1041] sm:$0xf]
  %1043 = vrot.lane.b32.xlu0 %v20, 127
  %v1044 = vpop.permute.xlu0 %1043
  %1045 = vrot.lane.b32.xlu0 %v21, 127
  %v1046 = vpop.permute.xlu0 %1045
  %1047 = vrot.lane.b32.xlu0 %v22, 127
  %v1048 = vpop.permute.xlu0 %1047
  %1049 = vrot.lane.b32.xlu0 %v23, 127
  %v1050 = vpop.permute.xlu0 %1049
  %1051 = vrot.lane.b32.xlu0 %v24, 127
  %v1052 = vpop.permute.xlu0 %1051
  %vm1053 = vcmask 1039360
  %v1054 = vsel %vm1053, %v1044, %v1046
  %v1055 = vsel %vm1053, %v1046, %v1048
  %v1056 = vsel %vm1053, %v1048, %v1050
  %v1057 = vsel %vm1053, %v1050, %v1052
  %v1062 = vsel %vm845, %v1054, 0.0
  %v1063 = vsel %vm846, %v1055, 0.0
  %v1064 = vsel %vm847, %v1056, 0.0
  %v1065 = vsel %vm848, %v1057, 0.0
  %v1067 = vsel %vm49, %v1042, 0
  %v1070 = vsel %vm62, %v1062, 0
  %v1073 = vsel %vm62, %v1063, 0
  %v1076 = vsel %vm62, %v1064, 0
  %v1079 = vsel %vm62, %v1065, 0
  %1081 = vmatpush.msra.mxu0 0.0
  %1082 = vmatpush.msra.mxu0 0.0
  %1083 = vmatpush.msra.mxu0 0.0
  %1084 = vmatpush.msra.mxu0 0.0
  %1085 = vmatpush.msra.mxu0 0.0
  %1086 = vmatpush.msra.mxu0 0.0
  %1087 = vmatpush.msra.mxu0 0.0
  %1088 = vmatpush.msra.mxu0 0.0
  %1089 = vmatpush.msra.mxu0 0.0
  %1090 = vmatpush.msra.mxu0 0.0
  %1091 = vmatpush.msra.mxu0 0.0
  %1092 = vmatpush.msra.mxu0 0.0
  %1093 = vmatpush.msra.mxu0 0.0
  %1094 = vmatpush.msra.mxu0 0.0
  %1095 = vmatpush.msra.mxu0 0.0
  %1096 = vmatpush.msra.mxu0 %v1070
  %1097 = vmatmul.f32.gmra.mxu0 %v1067
  %v1098 = vpop.f32.mrf.mxu0
  %v1099 = vadd.f32 0.0, %v1098
  %1100 = vdwg.mxu0
  %1101 = vmatpush.msra.mxu0 0.0
  %1102 = vmatpush.msra.mxu0 0.0
  %1103 = vmatpush.msra.mxu0 0.0
  %1104 = vmatpush.msra.mxu0 0.0
  %1105 = vmatpush.msra.mxu0 0.0
  %1106 = vmatpush.msra.mxu0 0.0
  %1107 = vmatpush.msra.mxu0 0.0
  %1108 = vmatpush.msra.mxu0 0.0
  %1109 = vmatpush.msra.mxu0 0.0
  %1110 = vmatpush.msra.mxu0 0.0
  %1111 = vmatpush.msra.mxu0 0.0
  %1112 = vmatpush.msra.mxu0 0.0
  %1113 = vmatpush.msra.mxu0 0.0
  %1114 = vmatpush.msra.mxu0 0.0
  %1115 = vmatpush.msra.mxu0 0.0
  %1116 = vmatpush.msra.mxu0 %v1073
  %1117 = vmatmul.f32.gmra.mxu0 %v1067
  %v1118 = vpop.f32.mrf.mxu0
  %v1119 = vadd.f32 0.0, %v1118
  %1120 = vdwg.mxu0
  %1121 = vmatpush.msra.mxu0 0.0
  %1122 = vmatpush.msra.mxu0 0.0
  %1123 = vmatpush.msra.mxu0 0.0
  %1124 = vmatpush.msra.mxu0 0.0
  %1125 = vmatpush.msra.mxu0 0.0
  %1126 = vmatpush.msra.mxu0 0.0
  %1127 = vmatpush.msra.mxu0 0.0
  %1128 = vmatpush.msra.mxu0 0.0
  %1129 = vmatpush.msra.mxu0 0.0
  %1130 = vmatpush.msra.mxu0 0.0
  %1131 = vmatpush.msra.mxu0 0.0
  %1132 = vmatpush.msra.mxu0 0.0
  %1133 = vmatpush.msra.mxu0 0.0
  %1134 = vmatpush.msra.mxu0 0.0
  %1135 = vmatpush.msra.mxu0 0.0
  %1136 = vmatpush.msra.mxu0 %v1076
  %1137 = vmatmul.f32.gmra.mxu0 %v1067
  %v1138 = vpop.f32.mrf.mxu0
  %v1139 = vadd.f32 0.0, %v1138
  %1140 = vdwg.mxu0
  %1141 = vmatpush.msra.mxu0 0.0
  %1142 = vmatpush.msra.mxu0 0.0
  %1143 = vmatpush.msra.mxu0 0.0
  %1144 = vmatpush.msra.mxu0 0.0
  %1145 = vmatpush.msra.mxu0 0.0
  %1146 = vmatpush.msra.mxu0 0.0
  %1147 = vmatpush.msra.mxu0 0.0
  %1148 = vmatpush.msra.mxu0 0.0
  %1149 = vmatpush.msra.mxu0 0.0
  %1150 = vmatpush.msra.mxu0 0.0
  %1151 = vmatpush.msra.mxu0 0.0
  %1152 = vmatpush.msra.mxu0 0.0
  %1153 = vmatpush.msra.mxu0 0.0
  %1154 = vmatpush.msra.mxu0 0.0
  %1155 = vmatpush.msra.mxu0 0.0
  %1156 = vmatpush.msra.mxu0 %v1079
  %1157 = vmatmul.f32.gmra.mxu0 %v1067
  %v1158 = vpop.f32.mrf.mxu0
  %v1159 = vadd.f32 0.0, %v1158
  %1160 = vdwg.mxu0
  %v1161 = vadd.f32 %v979, %v1099
  %v1162 = vadd.f32 %v999, %v1119
  %v1163 = vadd.f32 %v1019, %v1139
  %v1164 = vadd.f32 %v1039, %v1159
  %vm1165 = vcmp.lt.s32.totalorder %v837, 15
  %vm1166 = vcmp.lt.s32.totalorder %v838, 15
  %vm1167 = vcmp.lt.s32.totalorder %v839, 15
  %vm1168 = vcmp.lt.s32.totalorder %v840, 15
  %vm1169 = vmand %vm845, %vm1165
  %vm1170 = vmand %vm846, %vm1166
  %vm1171 = vmand %vm847, %vm1167
  %vm1172 = vmand %vm848, %vm1168
  %s1173 = scalar_lea.vmem %s4, 8
  %v1174 = vld [vmem:[%s1173] sm:$0xf]
  %1175 = vrot.lane.b32.xlu0 %v20, 126
  %v1176 = vpop.permute.xlu0 %1175
  %1177 = vrot.lane.b32.xlu0 %v21, 126
  %v1178 = vpop.permute.xlu0 %1177
  %1179 = vrot.lane.b32.xlu0 %v22, 126
  %v1180 = vpop.permute.xlu0 %1179
  %1181 = vrot.lane.b32.xlu0 %v23, 126
  %v1182 = vpop.permute.xlu0 %1181
  %1183 = vrot.lane.b32.xlu0 %v24, 126
  %v1184 = vpop.permute.xlu0 %1183
  %vm1185 = vcmask 1031168
  %v1186 = vsel %vm1185, %v1176, %v1178
  %v1187 = vsel %vm1185, %v1178, %v1180
  %v1188 = vsel %vm1185, %v1180, %v1182
  %v1189 = vsel %vm1185, %v1182, %v1184
  %v1194 = vsel %vm1169, %v1186, 0.0
  %v1195 = vsel %vm1170, %v1187, 0.0
  %v1196 = vsel %vm1171, %v1188, 0.0
  %v1197 = vsel %vm1172, %v1189, 0.0
  %v1199 = vsel %vm49, %v1174, 0
  %v1202 = vsel %vm62, %v1194, 0
  %v1205 = vsel %vm62, %v1195, 0
  %v1208 = vsel %vm62, %v1196, 0
  %v1211 = vsel %vm62, %v1197, 0
  %1213 = vmatpush.msra.mxu0 0.0
  %1214 = vmatpush.msra.mxu0 0.0
  %1215 = vmatpush.msra.mxu0 0.0
  %1216 = vmatpush.msra.mxu0 0.0
  %1217 = vmatpush.msra.mxu0 0.0
  %1218 = vmatpush.msra.mxu0 0.0
  %1219 = vmatpush.msra.mxu0 0.0
  %1220 = vmatpush.msra.mxu0 0.0
  %1221 = vmatpush.msra.mxu0 0.0
  %1222 = vmatpush.msra.mxu0 0.0
  %1223 = vmatpush.msra.mxu0 0.0
  %1224 = vmatpush.msra.mxu0 0.0
  %1225 = vmatpush.msra.mxu0 0.0
  %1226 = vmatpush.msra.mxu0 0.0
  %1227 = vmatpush.msra.mxu0 0.0
  %1228 = vmatpush.msra.mxu0 %v1202
  %1229 = vmatmul.f32.gmra.mxu0 %v1199
  %v1230 = vpop.f32.mrf.mxu0
  %v1231 = vadd.f32 0.0, %v1230
  %1232 = vdwg.mxu0
  %1233 = vmatpush.msra.mxu0 0.0
  %1234 = vmatpush.msra.mxu0 0.0
  %1235 = vmatpush.msra.mxu0 0.0
  %1236 = vmatpush.msra.mxu0 0.0
  %1237 = vmatpush.msra.mxu0 0.0
  %1238 = vmatpush.msra.mxu0 0.0
  %1239 = vmatpush.msra.mxu0 0.0
  %1240 = vmatpush.msra.mxu0 0.0
  %1241 = vmatpush.msra.mxu0 0.0
  %1242 = vmatpush.msra.mxu0 0.0
  %1243 = vmatpush.msra.mxu0 0.0
  %1244 = vmatpush.msra.mxu0 0.0
  %1245 = vmatpush.msra.mxu0 0.0
  %1246 = vmatpush.msra.mxu0 0.0
  %1247 = vmatpush.msra.mxu0 0.0
  %1248 = vmatpush.msra.mxu0 %v1205
  %1249 = vmatmul.f32.gmra.mxu0 %v1199
  %v1250 = vpop.f32.mrf.mxu0
  %v1251 = vadd.f32 0.0, %v1250
  %1252 = vdwg.mxu0
  %1253 = vmatpush.msra.mxu0 0.0
  %1254 = vmatpush.msra.mxu0 0.0
  %1255 = vmatpush.msra.mxu0 0.0
  %1256 = vmatpush.msra.mxu0 0.0
  %1257 = vmatpush.msra.mxu0 0.0
  %1258 = vmatpush.msra.mxu0 0.0
  %1259 = vmatpush.msra.mxu0 0.0
  %1260 = vmatpush.msra.mxu0 0.0
  %1261 = vmatpush.msra.mxu0 0.0
  %1262 = vmatpush.msra.mxu0 0.0
  %1263 = vmatpush.msra.mxu0 0.0
  %1264 = vmatpush.msra.mxu0 0.0
  %1265 = vmatpush.msra.mxu0 0.0
  %1266 = vmatpush.msra.mxu0 0.0
  %1267 = vmatpush.msra.mxu0 0.0
  %1268 = vmatpush.msra.mxu0 %v1208
  %1269 = vmatmul.f32.gmra.mxu0 %v1199
  %v1270 = vpop.f32.mrf.mxu0
  %v1271 = vadd.f32 0.0, %v1270
  %1272 = vdwg.mxu0
  %1273 = vmatpush.msra.mxu0 0.0
  %1274 = vmatpush.msra.mxu0 0.0
  %1275 = vmatpush.msra.mxu0 0.0
  %1276 = vmatpush.msra.mxu0 0.0
  %1277 = vmatpush.msra.mxu0 0.0
  %1278 = vmatpush.msra.mxu0 0.0
  %1279 = vmatpush.msra.mxu0 0.0
  %1280 = vmatpush.msra.mxu0 0.0
  %1281 = vmatpush.msra.mxu0 0.0
  %1282 = vmatpush.msra.mxu0 0.0
  %1283 = vmatpush.msra.mxu0 0.0
  %1284 = vmatpush.msra.mxu0 0.0
  %1285 = vmatpush.msra.mxu0 0.0
  %1286 = vmatpush.msra.mxu0 0.0
  %1287 = vmatpush.msra.mxu0 0.0
  %1288 = vmatpush.msra.mxu0 %v1211
  %1289 = vmatmul.f32.gmra.mxu0 %v1199
  %v1290 = vpop.f32.mrf.mxu0
  %v1291 = vadd.f32 0.0, %v1290
  %1292 = vdwg.mxu0
  %v1293 = vadd.f32 %v1161, %v1231
  %v1294 = vadd.f32 %v1162, %v1251
  %v1295 = vadd.f32 %v1163, %v1271
  %v1296 = vadd.f32 %v1164, %v1291
  %s1297 = scalar_lea.vmem %s4, 12
  %v1298 = vld [vmem:[%s1297] sm:$0xf]
  %1299 = vrot.lane.b32.xlu0 %v20, 112
  %v1300 = vpop.permute.xlu0 %1299
  %1301 = vrot.lane.b32.xlu0 %v21, 112
  %v1302 = vpop.permute.xlu0 %1301
  %1303 = vrot.lane.b32.xlu0 %v22, 112
  %v1304 = vpop.permute.xlu0 %1303
  %1305 = vrot.lane.b32.xlu0 %v23, 112
  %v1306 = vpop.permute.xlu0 %1305
  %1307 = vrot.lane.b32.xlu0 %v24, 112
  %v1308 = vpop.permute.xlu0 %1307
  %vm1309 = vcmask 916480
  %v1310 = vsel %vm1309, %v1300, %v1302
  %v1311 = vsel %vm1309, %v1302, %v1304
  %v1312 = vsel %vm1309, %v1304, %v1306
  %v1313 = vsel %vm1309, %v1306, %v1308
  %v1318 = vsel %vm849, %v1310, 0.0
  %v1319 = vsel %vm850, %v1311, 0.0
  %v1320 = vsel %vm851, %v1312, 0.0
  %v1321 = vsel %vm852, %v1313, 0.0
  %v1323 = vsel %vm49, %v1298, 0
  %v1326 = vsel %vm62, %v1318, 0
  %v1329 = vsel %vm62, %v1319, 0
  %v1332 = vsel %vm62, %v1320, 0
  %v1335 = vsel %vm62, %v1321, 0
  %1337 = vmatpush.msra.mxu0 0.0
  %1338 = vmatpush.msra.mxu0 0.0
  %1339 = vmatpush.msra.mxu0 0.0
  %1340 = vmatpush.msra.mxu0 0.0
  %1341 = vmatpush.msra.mxu0 0.0
  %1342 = vmatpush.msra.mxu0 0.0
  %1343 = vmatpush.msra.mxu0 0.0
  %1344 = vmatpush.msra.mxu0 0.0
  %1345 = vmatpush.msra.mxu0 0.0
  %1346 = vmatpush.msra.mxu0 0.0
  %1347 = vmatpush.msra.mxu0 0.0
  %1348 = vmatpush.msra.mxu0 0.0
  %1349 = vmatpush.msra.mxu0 0.0
  %1350 = vmatpush.msra.mxu0 0.0
  %1351 = vmatpush.msra.mxu0 0.0
  %1352 = vmatpush.msra.mxu0 %v1326
  %1353 = vmatmul.f32.gmra.mxu0 %v1323
  %v1354 = vpop.f32.mrf.mxu0
  %v1355 = vadd.f32 0.0, %v1354
  %1356 = vdwg.mxu0
  %1357 = vmatpush.msra.mxu0 0.0
  %1358 = vmatpush.msra.mxu0 0.0
  %1359 = vmatpush.msra.mxu0 0.0
  %1360 = vmatpush.msra.mxu0 0.0
  %1361 = vmatpush.msra.mxu0 0.0
  %1362 = vmatpush.msra.mxu0 0.0
  %1363 = vmatpush.msra.mxu0 0.0
  %1364 = vmatpush.msra.mxu0 0.0
  %1365 = vmatpush.msra.mxu0 0.0
  %1366 = vmatpush.msra.mxu0 0.0
  %1367 = vmatpush.msra.mxu0 0.0
  %1368 = vmatpush.msra.mxu0 0.0
  %1369 = vmatpush.msra.mxu0 0.0
  %1370 = vmatpush.msra.mxu0 0.0
  %1371 = vmatpush.msra.mxu0 0.0
  %1372 = vmatpush.msra.mxu0 %v1329
  %1373 = vmatmul.f32.gmra.mxu0 %v1323
  %v1374 = vpop.f32.mrf.mxu0
  %v1375 = vadd.f32 0.0, %v1374
  %1376 = vdwg.mxu0
  %1377 = vmatpush.msra.mxu0 0.0
  %1378 = vmatpush.msra.mxu0 0.0
  %1379 = vmatpush.msra.mxu0 0.0
  %1380 = vmatpush.msra.mxu0 0.0
  %1381 = vmatpush.msra.mxu0 0.0
  %1382 = vmatpush.msra.mxu0 0.0
  %1383 = vmatpush.msra.mxu0 0.0
  %1384 = vmatpush.msra.mxu0 0.0
  %1385 = vmatpush.msra.mxu0 0.0
  %1386 = vmatpush.msra.mxu0 0.0
  %1387 = vmatpush.msra.mxu0 0.0
  %1388 = vmatpush.msra.mxu0 0.0
  %1389 = vmatpush.msra.mxu0 0.0
  %1390 = vmatpush.msra.mxu0 0.0
  %1391 = vmatpush.msra.mxu0 0.0
  %1392 = vmatpush.msra.mxu0 %v1332
  %1393 = vmatmul.f32.gmra.mxu0 %v1323
  %v1394 = vpop.f32.mrf.mxu0
  %v1395 = vadd.f32 0.0, %v1394
  %1396 = vdwg.mxu0
  %1397 = vmatpush.msra.mxu0 0.0
  %1398 = vmatpush.msra.mxu0 0.0
  %1399 = vmatpush.msra.mxu0 0.0
  %1400 = vmatpush.msra.mxu0 0.0
  %1401 = vmatpush.msra.mxu0 0.0
  %1402 = vmatpush.msra.mxu0 0.0
  %1403 = vmatpush.msra.mxu0 0.0
  %1404 = vmatpush.msra.mxu0 0.0
  %1405 = vmatpush.msra.mxu0 0.0
  %1406 = vmatpush.msra.mxu0 0.0
  %1407 = vmatpush.msra.mxu0 0.0
  %1408 = vmatpush.msra.mxu0 0.0
  %1409 = vmatpush.msra.mxu0 0.0
  %1410 = vmatpush.msra.mxu0 0.0
  %1411 = vmatpush.msra.mxu0 0.0
  %1412 = vmatpush.msra.mxu0 %v1335
  %1413 = vmatmul.f32.gmra.mxu0 %v1323
  %v1414 = vpop.f32.mrf.mxu0
  %v1415 = vadd.f32 0.0, %v1414
  %1416 = vdwg.mxu0
  %v1417 = vadd.f32 %v1293, %v1355
  %v1418 = vadd.f32 %v1294, %v1375
  %v1419 = vadd.f32 %v1295, %v1395
  %v1420 = vadd.f32 %v1296, %v1415
  %s1421 = scalar_lea.vmem %s4, 16
  %v1422 = vld [vmem:[%s1421] sm:$0xf]
  %1423 = vrot.lane.b32.xlu0 %v20, 110
  %v1424 = vpop.permute.xlu0 %1423
  %1425 = vrot.lane.b32.xlu0 %v21, 110
  %v1426 = vpop.permute.xlu0 %1425
  %1427 = vrot.lane.b32.xlu0 %v22, 110
  %v1428 = vpop.permute.xlu0 %1427
  %1429 = vrot.lane.b32.xlu0 %v23, 110
  %v1430 = vpop.permute.xlu0 %1429
  %1431 = vrot.lane.b32.xlu0 %v24, 110
  %v1432 = vpop.permute.xlu0 %1431
  %vm1433 = vcmask 900096
  %v1434 = vsel %vm1433, %v1424, %v1426
  %v1435 = vsel %vm1433, %v1426, %v1428
  %v1436 = vsel %vm1433, %v1428, %v1430
  %v1437 = vsel %vm1433, %v1430, %v1432
  %v1442 = vsel %vm1165, %v1434, 0.0
  %v1443 = vsel %vm1166, %v1435, 0.0
  %v1444 = vsel %vm1167, %v1436, 0.0
  %v1445 = vsel %vm1168, %v1437, 0.0
  %v1447 = vsel %vm49, %v1422, 0
  %v1450 = vsel %vm62, %v1442, 0
  %v1453 = vsel %vm62, %v1443, 0
  %v1456 = vsel %vm62, %v1444, 0
  %v1459 = vsel %vm62, %v1445, 0
  %1461 = vmatpush.msra.mxu0 0.0
  %1462 = vmatpush.msra.mxu0 0.0
  %1463 = vmatpush.msra.mxu0 0.0
  %1464 = vmatpush.msra.mxu0 0.0
  %1465 = vmatpush.msra.mxu0 0.0
  %1466 = vmatpush.msra.mxu0 0.0
  %1467 = vmatpush.msra.mxu0 0.0
  %1468 = vmatpush.msra.mxu0 0.0
  %1469 = vmatpush.msra.mxu0 0.0
  %1470 = vmatpush.msra.mxu0 0.0
  %1471 = vmatpush.msra.mxu0 0.0
  %1472 = vmatpush.msra.mxu0 0.0
  %1473 = vmatpush.msra.mxu0 0.0
  %1474 = vmatpush.msra.mxu0 0.0
  %1475 = vmatpush.msra.mxu0 0.0
  %1476 = vmatpush.msra.mxu0 %v1450
  %1477 = vmatmul.f32.gmra.mxu0 %v1447
  %v1478 = vpop.f32.mrf.mxu0
  %v1479 = vadd.f32 0.0, %v1478
  %1480 = vdwg.mxu0
  %1481 = vmatpush.msra.mxu0 0.0
  %1482 = vmatpush.msra.mxu0 0.0
  %1483 = vmatpush.msra.mxu0 0.0
  %1484 = vmatpush.msra.mxu0 0.0
  %1485 = vmatpush.msra.mxu0 0.0
  %1486 = vmatpush.msra.mxu0 0.0
  %1487 = vmatpush.msra.mxu0 0.0
  %1488 = vmatpush.msra.mxu0 0.0
  %1489 = vmatpush.msra.mxu0 0.0
  %1490 = vmatpush.msra.mxu0 0.0
  %1491 = vmatpush.msra.mxu0 0.0
  %1492 = vmatpush.msra.mxu0 0.0
  %1493 = vmatpush.msra.mxu0 0.0
  %1494 = vmatpush.msra.mxu0 0.0
  %1495 = vmatpush.msra.mxu0 0.0
  %1496 = vmatpush.msra.mxu0 %v1453
  %1497 = vmatmul.f32.gmra.mxu0 %v1447
  %v1498 = vpop.f32.mrf.mxu0
  %v1499 = vadd.f32 0.0, %v1498
  %1500 = vdwg.mxu0
  %1501 = vmatpush.msra.mxu0 0.0
  %1502 = vmatpush.msra.mxu0 0.0
  %1503 = vmatpush.msra.mxu0 0.0
  %1504 = vmatpush.msra.mxu0 0.0
  %1505 = vmatpush.msra.mxu0 0.0
  %1506 = vmatpush.msra.mxu0 0.0
  %1507 = vmatpush.msra.mxu0 0.0
  %1508 = vmatpush.msra.mxu0 0.0
  %1509 = vmatpush.msra.mxu0 0.0
  %1510 = vmatpush.msra.mxu0 0.0
  %1511 = vmatpush.msra.mxu0 0.0
  %1512 = vmatpush.msra.mxu0 0.0
  %1513 = vmatpush.msra.mxu0 0.0
  %1514 = vmatpush.msra.mxu0 0.0
  %1515 = vmatpush.msra.mxu0 0.0
  %1516 = vmatpush.msra.mxu0 %v1456
  %1517 = vmatmul.f32.gmra.mxu0 %v1447
  %v1518 = vpop.f32.mrf.mxu0
  %v1519 = vadd.f32 0.0, %v1518
  %1520 = vdwg.mxu0
  %1521 = vmatpush.msra.mxu0 0.0
  %1522 = vmatpush.msra.mxu0 0.0
  %1523 = vmatpush.msra.mxu0 0.0
  %1524 = vmatpush.msra.mxu0 0.0
  %1525 = vmatpush.msra.mxu0 0.0
  %1526 = vmatpush.msra.mxu0 0.0
  %1527 = vmatpush.msra.mxu0 0.0
  %1528 = vmatpush.msra.mxu0 0.0
  %1529 = vmatpush.msra.mxu0 0.0
  %1530 = vmatpush.msra.mxu0 0.0
  %1531 = vmatpush.msra.mxu0 0.0
  %1532 = vmatpush.msra.mxu0 0.0
  %1533 = vmatpush.msra.mxu0 0.0
  %1534 = vmatpush.msra.mxu0 0.0
  %1535 = vmatpush.msra.mxu0 0.0
  %1536 = vmatpush.msra.mxu0 %v1459
  %1537 = vmatmul.f32.gmra.mxu0 %v1447
  %v1538 = vpop.f32.mrf.mxu0
  %v1539 = vadd.f32 0.0, %v1538
  %1540 = vdwg.mxu0
  %v1541 = vadd.f32 %v1417, %v1479
  %v1542 = vadd.f32 %v1418, %v1499
  %v1543 = vadd.f32 %v1419, %v1519
  %v1544 = vadd.f32 %v1420, %v1539
  %vm1545 = vcmp.lt.s32.totalorder %v833, 240
  %vm1546 = vcmp.lt.s32.totalorder %v834, 240
  %vm1547 = vcmp.lt.s32.totalorder %v835, 240
  %vm1548 = vcmp.lt.s32.totalorder %v836, 240
  %vm1549 = vmand %vm1545, %vm849
  %vm1550 = vmand %vm1546, %vm850
  %vm1551 = vmand %vm1547, %vm851
  %vm1552 = vmand %vm1548, %vm852
  %s1553 = scalar_lea.vmem %s4, 20
  %v1554 = vld [vmem:[%s1553] sm:$0xf]
  %1555 = vrot.lane.b32.xlu0 %v20, 96
  %v1556 = vpop.permute.xlu0 %1555
  %1557 = vrot.lane.b32.xlu0 %v21, 96
  %v1558 = vpop.permute.xlu0 %1557
  %1559 = vrot.lane.b32.xlu0 %v22, 96
  %v1560 = vpop.permute.xlu0 %1559
  %1561 = vrot.lane.b32.xlu0 %v23, 96
  %v1562 = vpop.permute.xlu0 %1561
  %1563 = vrot.lane.b32.xlu0 %v24, 96
  %v1564 = vpop.permute.xlu0 %1563
  %vm1565 = vcmask 785408
  %v1566 = vsel %vm1565, %v1556, %v1558
  %v1567 = vsel %vm1565, %v1558, %v1560
  %v1568 = vsel %vm1565, %v1560, %v1562
  %v1569 = vsel %vm1565, %v1562, %v1564
  %v1574 = vsel %vm1549, %v1566, 0.0
  %v1575 = vsel %vm1550, %v1567, 0.0
  %v1576 = vsel %vm1551, %v1568, 0.0
  %v1577 = vsel %vm1552, %v1569, 0.0
  %v1579 = vsel %vm49, %v1554, 0
  %v1582 = vsel %vm62, %v1574, 0
  %v1585 = vsel %vm62, %v1575, 0
  %v1588 = vsel %vm62, %v1576, 0
  %v1591 = vsel %vm62, %v1577, 0
  %1593 = vmatpush.msra.mxu0 0.0
  %1594 = vmatpush.msra.mxu0 0.0
  %1595 = vmatpush.msra.mxu0 0.0
  %1596 = vmatpush.msra.mxu0 0.0
  %1597 = vmatpush.msra.mxu0 0.0
  %1598 = vmatpush.msra.mxu0 0.0
  %1599 = vmatpush.msra.mxu0 0.0
  %1600 = vmatpush.msra.mxu0 0.0
  %1601 = vmatpush.msra.mxu0 0.0
  %1602 = vmatpush.msra.mxu0 0.0
  %1603 = vmatpush.msra.mxu0 0.0
  %1604 = vmatpush.msra.mxu0 0.0
  %1605 = vmatpush.msra.mxu0 0.0
  %1606 = vmatpush.msra.mxu0 0.0
  %1607 = vmatpush.msra.mxu0 0.0
  %1608 = vmatpush.msra.mxu0 %v1582
  %1609 = vmatmul.f32.gmra.mxu0 %v1579
  %v1610 = vpop.f32.mrf.mxu0
  %v1611 = vadd.f32 0.0, %v1610
  %1612 = vdwg.mxu0
  %1613 = vmatpush.msra.mxu0 0.0
  %1614 = vmatpush.msra.mxu0 0.0
  %1615 = vmatpush.msra.mxu0 0.0
  %1616 = vmatpush.msra.mxu0 0.0
  %1617 = vmatpush.msra.mxu0 0.0
  %1618 = vmatpush.msra.mxu0 0.0
  %1619 = vmatpush.msra.mxu0 0.0
  %1620 = vmatpush.msra.mxu0 0.0
  %1621 = vmatpush.msra.mxu0 0.0
  %1622 = vmatpush.msra.mxu0 0.0
  %1623 = vmatpush.msra.mxu0 0.0
  %1624 = vmatpush.msra.mxu0 0.0
  %1625 = vmatpush.msra.mxu0 0.0
  %1626 = vmatpush.msra.mxu0 0.0
  %1627 = vmatpush.msra.mxu0 0.0
  %1628 = vmatpush.msra.mxu0 %v1585
  %1629 = vmatmul.f32.gmra.mxu0 %v1579
  %v1630 = vpop.f32.mrf.mxu0
  %v1631 = vadd.f32 0.0, %v1630
  %1632 = vdwg.mxu0
  %1633 = vmatpush.msra.mxu0 0.0
  %1634 = vmatpush.msra.mxu0 0.0
  %1635 = vmatpush.msra.mxu0 0.0
  %1636 = vmatpush.msra.mxu0 0.0
  %1637 = vmatpush.msra.mxu0 0.0
  %1638 = vmatpush.msra.mxu0 0.0
  %1639 = vmatpush.msra.mxu0 0.0
  %1640 = vmatpush.msra.mxu0 0.0
  %1641 = vmatpush.msra.mxu0 0.0
  %1642 = vmatpush.msra.mxu0 0.0
  %1643 = vmatpush.msra.mxu0 0.0
  %1644 = vmatpush.msra.mxu0 0.0
  %1645 = vmatpush.msra.mxu0 0.0
  %1646 = vmatpush.msra.mxu0 0.0
  %1647 = vmatpush.msra.mxu0 0.0
  %1648 = vmatpush.msra.mxu0 %v1588
  %1649 = vmatmul.f32.gmra.mxu0 %v1579
  %v1650 = vpop.f32.mrf.mxu0
  %v1651 = vadd.f32 0.0, %v1650
  %1652 = vdwg.mxu0
  %1653 = vmatpush.msra.mxu0 0.0
  %1654 = vmatpush.msra.mxu0 0.0
  %1655 = vmatpush.msra.mxu0 0.0
  %1656 = vmatpush.msra.mxu0 0.0
  %1657 = vmatpush.msra.mxu0 0.0
  %1658 = vmatpush.msra.mxu0 0.0
  %1659 = vmatpush.msra.mxu0 0.0
  %1660 = vmatpush.msra.mxu0 0.0
  %1661 = vmatpush.msra.mxu0 0.0
  %1662 = vmatpush.msra.mxu0 0.0
  %1663 = vmatpush.msra.mxu0 0.0
  %1664 = vmatpush.msra.mxu0 0.0
  %1665 = vmatpush.msra.mxu0 0.0
  %1666 = vmatpush.msra.mxu0 0.0
  %1667 = vmatpush.msra.mxu0 0.0
  %1668 = vmatpush.msra.mxu0 %v1591
  %1669 = vmatmul.f32.gmra.mxu0 %v1579
  %v1670 = vpop.f32.mrf.mxu0
  %v1671 = vadd.f32 0.0, %v1670
  %1672 = vdwg.mxu0
  %v1673 = vadd.f32 %v1541, %v1611
  %v1674 = vadd.f32 %v1542, %v1631
  %v1675 = vadd.f32 %v1543, %v1651
  %v1676 = vadd.f32 %v1544, %v1671
  %s1677 = scalar_lea.vmem %s4, 24
  %v1678 = vld [vmem:[%s1677] sm:$0xf]
  %1679 = vrot.lane.b32.xlu0 %v20, 95
  %v1680 = vpop.permute.xlu0 %1679
  %1681 = vrot.lane.b32.xlu0 %v21, 95
  %v1682 = vpop.permute.xlu0 %1681
  %1683 = vrot.lane.b32.xlu0 %v22, 95
  %v1684 = vpop.permute.xlu0 %1683
  %1685 = vrot.lane.b32.xlu0 %v23, 95
  %v1686 = vpop.permute.xlu0 %1685
  %1687 = vrot.lane.b32.xlu0 %v24, 95
  %v1688 = vpop.permute.xlu0 %1687
  %vm1689 = vcmask 777216
  %v1690 = vsel %vm1689, %v1680, %v1682
  %v1691 = vsel %vm1689, %v1682, %v1684
  %v1692 = vsel %vm1689, %v1684, %v1686
  %v1693 = vsel %vm1689, %v1686, %v1688
  %v1698 = vsel %vm1545, %v1690, 0.0
  %v1699 = vsel %vm1546, %v1691, 0.0
  %v1700 = vsel %vm1547, %v1692, 0.0
  %v1701 = vsel %vm1548, %v1693, 0.0
  %v1703 = vsel %vm49, %v1678, 0
  %v1706 = vsel %vm62, %v1698, 0
  %v1709 = vsel %vm62, %v1699, 0
  %v1712 = vsel %vm62, %v1700, 0
  %v1715 = vsel %vm62, %v1701, 0
  %1717 = vmatpush.msra.mxu0 0.0
  %1718 = vmatpush.msra.mxu0 0.0
  %1719 = vmatpush.msra.mxu0 0.0
  %1720 = vmatpush.msra.mxu0 0.0
  %1721 = vmatpush.msra.mxu0 0.0
  %1722 = vmatpush.msra.mxu0 0.0
  %1723 = vmatpush.msra.mxu0 0.0
  %1724 = vmatpush.msra.mxu0 0.0
  %1725 = vmatpush.msra.mxu0 0.0
  %1726 = vmatpush.msra.mxu0 0.0
  %1727 = vmatpush.msra.mxu0 0.0
  %1728 = vmatpush.msra.mxu0 0.0
  %1729 = vmatpush.msra.mxu0 0.0
  %1730 = vmatpush.msra.mxu0 0.0
  %1731 = vmatpush.msra.mxu0 0.0
  %1732 = vmatpush.msra.mxu0 %v1706
  %1733 = vmatmul.f32.gmra.mxu0 %v1703
  %v1734 = vpop.f32.mrf.mxu0
  %v1735 = vadd.f32 0.0, %v1734
  %1736 = vdwg.mxu0
  %1737 = vmatpush.msra.mxu0 0.0
  %1738 = vmatpush.msra.mxu0 0.0
  %1739 = vmatpush.msra.mxu0 0.0
  %1740 = vmatpush.msra.mxu0 0.0
  %1741 = vmatpush.msra.mxu0 0.0
  %1742 = vmatpush.msra.mxu0 0.0
  %1743 = vmatpush.msra.mxu0 0.0
  %1744 = vmatpush.msra.mxu0 0.0
  %1745 = vmatpush.msra.mxu0 0.0
  %1746 = vmatpush.msra.mxu0 0.0
  %1747 = vmatpush.msra.mxu0 0.0
  %1748 = vmatpush.msra.mxu0 0.0
  %1749 = vmatpush.msra.mxu0 0.0
  %1750 = vmatpush.msra.mxu0 0.0
  %1751 = vmatpush.msra.mxu0 0.0
  %1752 = vmatpush.msra.mxu0 %v1709
  %1753 = vmatmul.f32.gmra.mxu0 %v1703
  %v1754 = vpop.f32.mrf.mxu0
  %v1755 = vadd.f32 0.0, %v1754
  %1756 = vdwg.mxu0
  %1757 = vmatpush.msra.mxu0 0.0
  %1758 = vmatpush.msra.mxu0 0.0
  %1759 = vmatpush.msra.mxu0 0.0
  %1760 = vmatpush.msra.mxu0 0.0
  %1761 = vmatpush.msra.mxu0 0.0
  %1762 = vmatpush.msra.mxu0 0.0
  %1763 = vmatpush.msra.mxu0 0.0
  %1764 = vmatpush.msra.mxu0 0.0
  %1765 = vmatpush.msra.mxu0 0.0
  %1766 = vmatpush.msra.mxu0 0.0
  %1767 = vmatpush.msra.mxu0 0.0
  %1768 = vmatpush.msra.mxu0 0.0
  %1769 = vmatpush.msra.mxu0 0.0
  %1770 = vmatpush.msra.mxu0 0.0
  %1771 = vmatpush.msra.mxu0 0.0
  %1772 = vmatpush.msra.mxu0 %v1712
  %1773 = vmatmul.f32.gmra.mxu0 %v1703
  %v1774 = vpop.f32.mrf.mxu0
  %v1775 = vadd.f32 0.0, %v1774
  %1776 = vdwg.mxu0
  %1777 = vmatpush.msra.mxu0 0.0
  %1778 = vmatpush.msra.mxu0 0.0
  %1779 = vmatpush.msra.mxu0 0.0
  %1780 = vmatpush.msra.mxu0 0.0
  %1781 = vmatpush.msra.mxu0 0.0
  %1782 = vmatpush.msra.mxu0 0.0
  %1783 = vmatpush.msra.mxu0 0.0
  %1784 = vmatpush.msra.mxu0 0.0
  %1785 = vmatpush.msra.mxu0 0.0
  %1786 = vmatpush.msra.mxu0 0.0
  %1787 = vmatpush.msra.mxu0 0.0
  %1788 = vmatpush.msra.mxu0 0.0
  %1789 = vmatpush.msra.mxu0 0.0
  %1790 = vmatpush.msra.mxu0 0.0
  %1791 = vmatpush.msra.mxu0 0.0
  %1792 = vmatpush.msra.mxu0 %v1715
  %1793 = vmatmul.f32.gmra.mxu0 %v1703
  %v1794 = vpop.f32.mrf.mxu0
  %v1795 = vadd.f32 0.0, %v1794
  %1796 = vdwg.mxu0
  %v1797 = vadd.f32 %v1673, %v1735
  %v1798 = vadd.f32 %v1674, %v1755
  %v1799 = vadd.f32 %v1675, %v1775
  %v1800 = vadd.f32 %v1676, %v1795
  %vm1801 = vmand %vm1545, %vm1165
  %vm1802 = vmand %vm1546, %vm1166
  %vm1803 = vmand %vm1547, %vm1167
  %vm1804 = vmand %vm1548, %vm1168
  %s1805 = scalar_lea.vmem %s4, 28
  %v1806 = vld [vmem:[%s1805] sm:$0xf]
  %1807 = vrot.lane.b32.xlu0 %v20, 94
  %v1808 = vpop.permute.xlu0 %1807
  %1809 = vrot.lane.b32.xlu0 %v21, 94
  %v1810 = vpop.permute.xlu0 %1809
  %1811 = vrot.lane.b32.xlu0 %v22, 94
  %v1812 = vpop.permute.xlu0 %1811
  %1813 = vrot.lane.b32.xlu0 %v23, 94
  %v1814 = vpop.permute.xlu0 %1813
  %1815 = vrot.lane.b32.xlu0 %v24, 94
  %v1816 = vpop.permute.xlu0 %1815
  %vm1817 = vcmask 769024
  %v1818 = vsel %vm1817, %v1808, %v1810
  %v1819 = vsel %vm1817, %v1810, %v1812
  %v1820 = vsel %vm1817, %v1812, %v1814
  %v1821 = vsel %vm1817, %v1814, %v1816
  %v1826 = vsel %vm1801, %v1818, 0.0
  %v1827 = vsel %vm1802, %v1819, 0.0
  %v1828 = vsel %vm1803, %v1820, 0.0
  %v1829 = vsel %vm1804, %v1821, 0.0
  %v1831 = vsel %vm49, %v1806, 0
  %v1834 = vsel %vm62, %v1826, 0
  %v1837 = vsel %vm62, %v1827, 0
  %v1840 = vsel %vm62, %v1828, 0
  %v1843 = vsel %vm62, %v1829, 0
  %1845 = vmatpush.msra.mxu0 0.0
  %1846 = vmatpush.msra.mxu0 0.0
  %1847 = vmatpush.msra.mxu0 0.0
  %1848 = vmatpush.msra.mxu0 0.0
  %1849 = vmatpush.msra.mxu0 0.0
  %1850 = vmatpush.msra.mxu0 0.0
  %1851 = vmatpush.msra.mxu0 0.0
  %1852 = vmatpush.msra.mxu0 0.0
  %1853 = vmatpush.msra.mxu0 0.0
  %1854 = vmatpush.msra.mxu0 0.0
  %1855 = vmatpush.msra.mxu0 0.0
  %1856 = vmatpush.msra.mxu0 0.0
  %1857 = vmatpush.msra.mxu0 0.0
  %1858 = vmatpush.msra.mxu0 0.0
  %1859 = vmatpush.msra.mxu0 0.0
  %1860 = vmatpush.msra.mxu0 %v1834
  %1861 = vmatmul.f32.gmra.mxu0 %v1831
  %v1862 = vpop.f32.mrf.mxu0
  %v1863 = vadd.f32 0.0, %v1862
  %1864 = vdwg.mxu0
  %1865 = vmatpush.msra.mxu0 0.0
  %1866 = vmatpush.msra.mxu0 0.0
  %1867 = vmatpush.msra.mxu0 0.0
  %1868 = vmatpush.msra.mxu0 0.0
  %1869 = vmatpush.msra.mxu0 0.0
  %1870 = vmatpush.msra.mxu0 0.0
  %1871 = vmatpush.msra.mxu0 0.0
  %1872 = vmatpush.msra.mxu0 0.0
  %1873 = vmatpush.msra.mxu0 0.0
  %1874 = vmatpush.msra.mxu0 0.0
  %1875 = vmatpush.msra.mxu0 0.0
  %1876 = vmatpush.msra.mxu0 0.0
  %1877 = vmatpush.msra.mxu0 0.0
  %1878 = vmatpush.msra.mxu0 0.0
  %1879 = vmatpush.msra.mxu0 0.0
  %1880 = vmatpush.msra.mxu0 %v1837
  %1881 = vmatmul.f32.gmra.mxu0 %v1831
  %v1882 = vpop.f32.mrf.mxu0
  %v1883 = vadd.f32 0.0, %v1882
  %1884 = vdwg.mxu0
  %1885 = vmatpush.msra.mxu0 0.0
  %1886 = vmatpush.msra.mxu0 0.0
  %1887 = vmatpush.msra.mxu0 0.0
  %1888 = vmatpush.msra.mxu0 0.0
  %1889 = vmatpush.msra.mxu0 0.0
  %1890 = vmatpush.msra.mxu0 0.0
  %1891 = vmatpush.msra.mxu0 0.0
  %1892 = vmatpush.msra.mxu0 0.0
  %1893 = vmatpush.msra.mxu0 0.0
  %1894 = vmatpush.msra.mxu0 0.0
  %1895 = vmatpush.msra.mxu0 0.0
  %1896 = vmatpush.msra.mxu0 0.0
  %1897 = vmatpush.msra.mxu0 0.0
  %1898 = vmatpush.msra.mxu0 0.0
  %1899 = vmatpush.msra.mxu0 0.0
  %1900 = vmatpush.msra.mxu0 %v1840
  %1901 = vmatmul.f32.gmra.mxu0 %v1831
  %v1902 = vpop.f32.mrf.mxu0
  %v1903 = vadd.f32 0.0, %v1902
  %1904 = vdwg.mxu0
  %1905 = vmatpush.msra.mxu0 0.0
  %1906 = vmatpush.msra.mxu0 0.0
  %1907 = vmatpush.msra.mxu0 0.0
  %1908 = vmatpush.msra.mxu0 0.0
  %1909 = vmatpush.msra.mxu0 0.0
  %1910 = vmatpush.msra.mxu0 0.0
  %1911 = vmatpush.msra.mxu0 0.0
  %1912 = vmatpush.msra.mxu0 0.0
  %1913 = vmatpush.msra.mxu0 0.0
  %1914 = vmatpush.msra.mxu0 0.0
  %1915 = vmatpush.msra.mxu0 0.0
  %1916 = vmatpush.msra.mxu0 0.0
  %1917 = vmatpush.msra.mxu0 0.0
  %1918 = vmatpush.msra.mxu0 0.0
  %1919 = vmatpush.msra.mxu0 0.0
  %1920 = vmatpush.msra.mxu0 %v1843
  %1921 = vmatmul.f32.gmra.mxu0 %v1831
  %v1922 = vpop.f32.mrf.mxu0
  %v1923 = vadd.f32 0.0, %v1922
  %1924 = vdwg.mxu0
  %v1925 = vadd.f32 %v1797, %v1863
  %v1926 = vadd.f32 %v1798, %v1883
  %v1927 = vadd.f32 %v1799, %v1903
  %v1928 = vadd.f32 %v1800, %v1923
  %v1929 = vld [vmem:[%s1] sm:$0xff]
  %v1930 = vld [vmem:[%s1 + $0x8] sm:$0xff]
  %v1935 = vrot.slane %v1926, 4
  %v1936 = vrot.slane %v1928, 4
  %vm1937 = vcmask 1043456
  %v1938 = vsel %vm1937, %v1925, %v1935
  %v1939 = vsel %vm1937, %v1927, %v1936
  %v1942 = vadd.f32 %v1929, %v1938
  %v1943 = vadd.f32 %v1930, %v1939
  %1944 = vst [vmem:[%s5] sm:$0xff] %v1942
  %1945 = vst [vmem:[%s5 + $0x8] sm:$0xff] %v1943
  // Predicated region
  $region22: #{fourier_block_forward.1} parent=0 // pred_check
    _
  $region23: #{fourier_block_forward.1} parent=0 // pred_check_branch
    %1947 = sbr.rel (0) target = $region25
  $region24: #{fourier_block_forward.1} parent=0 // pred_region
    _
  $region25: #{fourier_block_forward.1} parent=0 // pred_fallthru
    _
  // Predicated region
  $region26: #{fourier_block_forward.1} parent=0 // pred_check
    _
  $region27: #{fourier_block_forward.1} parent=0 // pred_check_branch
    %1949 = sbr.rel (0) target = $region29
  $region28: #{fourier_block_forward.1} parent=0 // pred_region
    _
  $region29: #{fourier_block_forward.1} parent=0 // pred_fallthru
    _

</llo_original>
